<compile_context>
chip_gen: v7x
topology: tpu7x:2x2x1
jax: 0.10.0
libtpu: 0.0.40
codegen_flags: <defaults>
</compile_context>

<pallas_src>
import functools

import jax
import jax.numpy as jnp
from jax.experimental import pallas as pl
from jax.experimental.pallas import tpu as pltpu

H1 = 512
H2 = 1024
N_CLASSES = 6
N_CLASSES_PAD = 128   # lane-aligned padded logit width (unmasked vst)
K_ALIGN = 256         # pad K only to a multiple of this
TB_MAX = 512          # max batch tile


def _round_up(x, m):
    return (x + m - 1) // m * m


def _cdiv(a, b):
    return -(-a // b)


def _device_kind():
    try:
        return jax.devices()[0].device_kind.lower()
    except Exception:
        return ""


def _tpu_info():
    try:
        return pltpu.get_tpu_info()
    except Exception:
        return None


@functools.lru_cache(maxsize=None)
def _vmem_capacity_bytes():
    """Physical VMEM per TensorCore; queried, with a device-kind fallback."""
    info = _tpu_info()
    cap = getattr(info, "vmem_capacity_bytes", None) if info is not None else None
    if isinstance(cap, int) and cap > 0:
        return cap
    kind = _device_kind()
    if "v7" in kind or "7x" in kind:   # v7x: 64 MiB per TC
        return 64 << 20
    return 128 << 20                   # v5e / v6e: 128 MiB


@functools.lru_cache(maxsize=None)
def _tensorcores_per_chip():
    info = _tpu_info()
    for name in ("tensorcores_per_chip", "num_tensorcores", "num_cores", "core_count"):
        v = getattr(info, name, None) if info is not None else None
        if isinstance(v, int) and v > 0:
            return v
    kind = _device_kind()
    return 2 if ("v7" in kind or "7x" in kind) else 1


def _vmem_limit_bytes():
    # 60% of physical VMEM (headroom for double-buffers / internal scratch),
    # capped at 64 MiB which comfortably covers our <=~36 MiB footprint.
    return min(int(0.6 * _vmem_capacity_bytes()), 64 << 20)


def _max_tk():
    # Smaller K tile on 64 MiB-VMEM parts (v7x), larger on 128 MiB parts.
    return 4096 if _vmem_capacity_bytes() <= (64 << 20) else 8192


def _k_tiling(k):
    """Pad K only to a multiple of K_ALIGN; tk is an even divisor of padded K."""
    aligned = _round_up(max(int(k), K_ALIGN), K_ALIGN)
    nk = _cdiv(aligned, _max_tk())
    tk = _round_up(_cdiv(aligned, nk), K_ALIGN)
    return nk * tk, tk, nk


def _batch_tiling(B):
    tb = min(TB_MAX, _round_up(B, 8))
    # Multi-TC chips (v7x): ensure nb >= 2 so the "parallel" batch axis can
    # actually shard — only when B is large enough that re-streaming w1 on
    # both cores pays off.
    if _tensorcores_per_chip() >= 2 and B >= 512:
        tb = min(tb, _round_up(_cdiv(B, 2), 256))
    b_pad = _round_up(B, tb)
    return b_pad, tb, b_pad // tb


def _const_spec(shape):
    """BlockSpec for grid-invariant operands: resident, single-buffered."""
    idx = lambda i, k: (0,) * len(shape)
    try:
        return pl.BlockSpec(shape, idx, pipeline_mode=pl.Buffered(1))
    except Exception:  # older jax without pipeline_mode / Buffered
        return pl.BlockSpec(shape, idx)


def _mlp_kernel(x_ref, w1_ref, b1_ref, w2_ref, b2_ref, w3_ref, b3_ref,
                o_ref, h1_acc):
    k = pl.program_id(1)

    @pl.when(k == 0)
    def _():
        # Seed the accumulator with the layer-1 bias: removes the '+ b1' VPU
        # add (and the zeros materialization) from the serialized finalize.
        h1_acc[...] = jnp.broadcast_to(b1_ref[...], h1_acc.shape)

    # Layer-1 partial product: (tb, tk) @ (tk, H1); bf16 MXU inputs, f32 acc.
    h1_acc[...] += jnp.dot(x_ref[...], w1_ref[...],
                           preferred_element_type=jnp.float32)

    @pl.when(k == pl.num_programs(1) - 1)
    def _():
        # Finish layer 1 (ReLU), then layers 2 and 3 fused in-VMEM.
        h1 = jnp.maximum(h1_acc[...], 0.0)
        h2 = jnp.dot(h1.astype(jnp.bfloat16), w2_ref[...],
                     preferred_element_type=jnp.float32)
        h2 = jnp.maximum(h2 + b2_ref[...], 0.0)
        out = jnp.dot(h2.astype(jnp.bfloat16), w3_ref[...],
                      preferred_element_type=jnp.float32)
        o_ref[...] = (out + b3_ref[...]).astype(o_ref.dtype)


def prepare_params(w1, b1, w2, b2, w3, b3):
    """One-time prep: bf16 weights, 256-aligned K padding of w1, lane-padded w3/b3."""
    word_num = w1.shape[0]
    k_pad, _, _ = _k_tiling(word_num)
    if k_pad != word_num:
        w1 = jnp.pad(w1, ((0, k_pad - word_num), (0, 0)))
    w3_p = jnp.zeros((H2, N_CLASSES_PAD), jnp.float32).at[:, :N_CLASSES].set(w3)
    b3_p = jnp.zeros((1, N_CLASSES_PAD), jnp.float32).at[:, :N_CLASSES].set(b3)
    return (w1.astype(jnp.bfloat16), b1.astype(jnp.float32),
            w2.astype(jnp.bfloat16), b2.astype(jnp.float32),
            w3_p.astype(jnp.bfloat16), b3_p)


def mlp_forward(x, params, *, batch_tile=None):
    """x: (B, word_num). params: output of prepare_params. Returns (B, 6) f32."""
    w1, b1, w2, b2, w3p, b3p = params
    B, word_num = x.shape
    k_total = w1.shape[0]

    k_pad, tk, nk = _k_tiling(k_total)
    if k_pad != k_total:  # defensive: w1 was not pre-padded via prepare_params
        w1 = jnp.pad(w1, ((0, k_pad - k_total), (0, 0)))

    # Stream x in bf16: halves the dominant layer-1 HBM stream and drops the
    # per-step in-kernel cast. NOTE: bag-of-words counts > 256 lose low bits
    # in bf16; acceptable for this task, accumulation stays f32.
    x = x.astype(jnp.bfloat16)
    if k_pad != word_num:
        x = jnp.pad(x, ((0, 0), (0, k_pad - word_num)))

    if batch_tile is not None:
        tb = _round_up(min(batch_tile, _round_up(B, 8)), 8)
        b_pad = _round_up(B, tb)
        nb = b_pad // tb
    else:
        b_pad, tb, nb = _batch_tiling(B)
    if b_pad != B:
        x = jnp.pad(x, ((0, b_pad - B), (0, 0)))

    out_padded = pl.pallas_call(
        _mlp_kernel,
        out_shape=jax.ShapeDtypeStruct((b_pad, N_CLASSES_PAD), jnp.float32),
        grid_spec=pltpu.PrefetchScalarGridSpec(
            num_scalar_prefetch=0,
            grid=(nb, nk),
            in_specs=[
                pl.BlockSpec((tb, tk), lambda i, k: (i, k)),   # x  (streams)
                pl.BlockSpec((tk, H1), lambda i, k: (k, 0)),   # w1 (streams over K)
                _const_spec((1, H1)),                          # b1 (resident)
                _const_spec((H1, H2)),                         # w2 (resident)
                _const_spec((1, H2)),                          # b2 (resident)
                _const_spec((H2, N_CLASSES_PAD)),              # w3 (resident)
                _const_spec((1, N_CLASSES_PAD)),               # b3 (resident)
            ],
            out_specs=pl.BlockSpec((tb, N_CLASSES_PAD), lambda i, k: (i, 0)),
            scratch_shapes=[pltpu.VMEM((tb, H1), jnp.float32)],
        ),
        compiler_params=pltpu.CompilerParams(
            dimension_semantics=("parallel", "arbitrary"),
            vmem_limit_bytes=_vmem_limit_bytes(),
        ),
    )(x, w1, b1, w2, b2, w3p, b3p)

    return out_padded[:B, :N_CLASSES]


def init_params(key, word_num):
    """Parameter init matching PyTorch Linear shapes; weights stored (in, out)."""
    k1, k2, k3, k4, k5, k6 = jax.random.split(key, 6)

    def uniform(k, shape, fan_in):
        bound = 1.0 / jnp.sqrt(fan_in)
        return jax.random.uniform(k, shape, jnp.float32, -bound, bound)

    w1 = uniform(k1, (word_num, H1), word_num)
    b1 = uniform(k2, (1, H1), word_num)
    w2 = uniform(k3, (H1, H2), H1)
    b2 = uniform(k4, (1, H2), H1)
    w3 = uniform(k5, (H2, N_CLASSES), H2)
    b3 = uniform(k6, (1, N_CLASSES), H2)
    return w1, b1, w2, b2, w3, b3


if __name__ == "__main__":
    key = jax.random.PRNGKey(0)
    kx, kp = jax.random.split(key)

    batch = 8
    word_num = 256  # small synthetic vocabulary size

    x = jax.random.normal(kx, (batch, word_num), jnp.float32)
    raw_params = init_params(kp, word_num)
    params = prepare_params(*raw_params)      # one-time prep (bf16 + padding)

    fwd = jax.jit(mlp_forward)
    out = jax.block_until_ready(fwd(x, params))

    # Pure-JAX reference of the same forward pass with bf16-rounded operands
    # (kernel uses bf16 MXU inputs with f32 accumulation).
    w1, b1, w2, b2, w3, b3 = raw_params
    f32 = lambda a: a.astype(jnp.bfloat16).astype(jnp.float32)
    hp = jax.lax.Precision.HIGHEST
    ref = jnp.maximum(jnp.dot(f32(x), f32(w1), precision=hp) + b1, 0.0)
    ref = jnp.maximum(jnp.dot(f32(ref), f32(w2), precision=hp) + b2, 0.0)
    ref = jnp.dot(f32(ref), f32(w3), precision=hp) + b3

    assert out.shape == (batch, N_CLASSES)
    assert jnp.allclose(out, ref, atol=5e-2, rtol=5e-2), (
        float(jnp.max(jnp.abs(out - ref))))

    print("KERNEL_OK")
</pallas_src>

<mosaic_0001>
module attributes {stable_mosaic.version = 11 : i64} {
  func.func @_mlp_kernel(%arg0: i32, %arg1: i32, %arg2: memref<8x256xbf16, #tpu.memory_space<vmem>>, %arg3: memref<256x512xbf16, #tpu.memory_space<vmem>>, %arg4: memref<1x512xf32, #tpu.memory_space<vmem>>, %arg5: memref<512x1024xbf16, #tpu.memory_space<vmem>>, %arg6: memref<1x1024xf32, #tpu.memory_space<vmem>>, %arg7: memref<1024x128xbf16, #tpu.memory_space<vmem>>, %arg8: memref<1x128xf32, #tpu.memory_space<vmem>>, %arg9: memref<8x128xf32, #tpu.memory_space<vmem>>, %arg10: memref<8x512xf32, #tpu.memory_space<vmem>>) attributes {dimension_semantics = [#tpu.dimension_semantics<parallel>, #tpu.dimension_semantics<arbitrary>], iteration_bounds = array<i64: 1, 1>, scalar_prefetch = 0 : i64, scratch_operands = 1 : i64, tpu.core_type = #tpu.core_type<tc>, window_params = [{transform_indices = @transform_0, window_bounds = array<i64: 8, 256>}, {transform_indices = @transform_1, window_bounds = array<i64: 256, 512>}, {pipeline_mode = #tpu.pipeline_mode<synchronous>, transform_indices = @transform_2, window_bounds = array<i64: 1, 512>}, {pipeline_mode = #tpu.pipeline_mode<synchronous>, transform_indices = @transform_3, window_bounds = array<i64: 512, 1024>}, {pipeline_mode = #tpu.pipeline_mode<synchronous>, transform_indices = @transform_4, window_bounds = array<i64: 1, 1024>}, {pipeline_mode = #tpu.pipeline_mode<synchronous>, transform_indices = @transform_5, window_bounds = array<i64: 1024, 128>}, {pipeline_mode = #tpu.pipeline_mode<synchronous>, transform_indices = @transform_6, window_bounds = array<i64: 1, 128>}, {transform_indices = @transform_7, window_bounds = array<i64: 8, 128>}]} {
    %c0_i32 = arith.constant 0 : i32
    %0 = arith.cmpi eq, %arg1, %c0_i32 : i32
    %1 = arith.extui %0 : i1 to i32
    %c0_i32_0 = arith.constant 0 : i32
    %2 = arith.cmpi ne, %1, %c0_i32_0 : i32
    scf.if %2 {
      %c0_10 = arith.constant 0 : index
      %c0_11 = arith.constant 0 : index
      %12 = vector.load %arg4[%c0_10, %c0_11] : memref<1x512xf32, #tpu.memory_space<vmem>>, vector<1x512xf32>
      %13 = vector.shape_cast %12 : vector<1x512xf32> to vector<1x512xf32>
      %14 = vector.broadcast %13 : vector<1x512xf32> to vector<8x512xf32>
      %c0_12 = arith.constant 0 : index
      %c0_13 = arith.constant 0 : index
      %15 = vector.load %arg10[%c0_12, %c0_13] : memref<8x512xf32, #tpu.memory_space<vmem>>, vector<8x512xf32>
      tpu.vector_store %arg10[%c0_12, %c0_13], %14 {strides = array<i32>} : memref<8x512xf32, #tpu.memory_space<vmem>>, vector<8x512xf32>,
    } else {
    }
    %c0 = arith.constant 0 : index
    %c0_1 = arith.constant 0 : index
    %3 = vector.load %arg10[%c0, %c0_1] : memref<8x512xf32, #tpu.memory_space<vmem>>, vector<8x512xf32>
    %c0_2 = arith.constant 0 : index
    %c0_3 = arith.constant 0 : index
    %4 = vector.load %arg2[%c0_2, %c0_3] : memref<8x256xbf16, #tpu.memory_space<vmem>>, vector<8x256xbf16>
    %c0_4 = arith.constant 0 : index
    %c0_5 = arith.constant 0 : index
    %5 = vector.load %arg3[%c0_4, %c0_5] : memref<256x512xbf16, #tpu.memory_space<vmem>>, vector<256x512xbf16>
    %cst = arith.constant dense<0.000000e+00> : vector<8x512xf32>
    %6 = tpu.matmul %4, %5, %cst {dimension_numbers = #tpu.dot_dimension_numbers<[1], [0], [0], [1], [0, 0, 1, 1], [], []>} : vector<8x256xbf16>, vector<256x512xbf16>, vector<8x512xf32> -> vector<8x512xf32>
    %7 = arith.addf %3, %6 : vector<8x512xf32>
    %c0_6 = arith.constant 0 : index
    %c0_7 = arith.constant 0 : index
    %8 = vector.load %arg10[%c0_6, %c0_7] : memref<8x512xf32, #tpu.memory_space<vmem>>, vector<8x512xf32>
    tpu.vector_store %arg10[%c0_6, %c0_7], %7 {strides = array<i32>} : memref<8x512xf32, #tpu.memory_space<vmem>>, vector<8x512xf32>,
    %c0_i32_8 = arith.constant 0 : i32
    %9 = arith.cmpi eq, %arg1, %c0_i32_8 : i32
    %10 = arith.extui %9 : i1 to i32
    %c0_i32_9 = arith.constant 0 : i32
    %11 = arith.cmpi ne, %10, %c0_i32_9 : i32
    scf.if %11 {
      %c0_10 = arith.constant 0 : index
      %c0_11 = arith.constant 0 : index
      %12 = vector.load %arg10[%c0_10, %c0_11] : memref<8x512xf32, #tpu.memory_space<vmem>>, vector<8x512xf32>
      %cst_12 = arith.constant 0.000000e+00 : f32
      %13 = vector.broadcast %cst_12 : f32 to vector<8x512xf32>
      %14 = arith.maximumf %12, %13 : vector<8x512xf32>
      %15 = arith.truncf %14 : vector<8x512xf32> to vector<8x512xbf16>
      %c0_13 = arith.constant 0 : index
      %c0_14 = arith.constant 0 : index
      %16 = vector.load %arg5[%c0_13, %c0_14] : memref<512x1024xbf16, #tpu.memory_space<vmem>>, vector<512x1024xbf16>
      %cst_15 = arith.constant dense<0.000000e+00> : vector<8x1024xf32>
      %17 = tpu.matmul %15, %16, %cst_15 {dimension_numbers = #tpu.dot_dimension_numbers<[1], [0], [0], [1], [0, 0, 1, 1], [], []>} : vector<8x512xbf16>, vector<512x1024xbf16>, vector<8x1024xf32> -> vector<8x1024xf32>
      %c0_16 = arith.constant 0 : index
      %c0_17 = arith.constant 0 : index
      %18 = vector.load %arg6[%c0_16, %c0_17] : memref<1x1024xf32, #tpu.memory_space<vmem>>, vector<1x1024xf32>
      %19 = vector.broadcast %18 : vector<1x1024xf32> to vector<8x1024xf32>
      %20 = arith.addf %17, %19 : vector<8x1024xf32>
      %cst_18 = arith.constant 0.000000e+00 : f32
      %21 = vector.broadcast %cst_18 : f32 to vector<8x1024xf32>
      %22 = arith.maximumf %20, %21 : vector<8x1024xf32>
      %23 = arith.truncf %22 : vector<8x1024xf32> to vector<8x1024xbf16>
      %c0_19 = arith.constant 0 : index
      %c0_20 = arith.constant 0 : index
      %24 = vector.load %arg7[%c0_19, %c0_20] : memref<1024x128xbf16, #tpu.memory_space<vmem>>, vector<1024x128xbf16>
      %cst_21 = arith.constant dense<0.000000e+00> : vector<8x128xf32>
      %25 = tpu.matmul %23, %24, %cst_21 {dimension_numbers = #tpu.dot_dimension_numbers<[1], [0], [0], [1], [0, 0, 1, 1], [], []>} : vector<8x1024xbf16>, vector<1024x128xbf16>, vector<8x128xf32> -> vector<8x128xf32>
      %c0_22 = arith.constant 0 : index
      %c0_23 = arith.constant 0 : index
      %26 = vector.load %arg8[%c0_22, %c0_23] : memref<1x128xf32, #tpu.memory_space<vmem>>, vector<1x128xf32>
      %27 = vector.broadcast %26 : vector<1x128xf32> to vector<8x128xf32>
      %28 = arith.addf %25, %27 : vector<8x128xf32>
      %c0_24 = arith.constant 0 : index
      %c0_25 = arith.constant 0 : index
      %29 = vector.load %arg9[%c0_24, %c0_25] : memref<8x128xf32, #tpu.memory_space<vmem>>, vector<8x128xf32>
      tpu.vector_store %arg9[%c0_24, %c0_25], %28 {strides = array<i32>} : memref<8x128xf32, #tpu.memory_space<vmem>>, vector<8x128xf32>,
    } else {
    }
    return
  }
  func.func @transform_0(%arg0: i32, %arg1: i32) -> (i32, i32) {
    %c0_i32 = arith.constant 0 : i32
    return %arg0, %arg1 : i32, i32
  }
  func.func @transform_1(%arg0: i32, %arg1: i32) -> (i32, i32) {
    %c0_i32 = arith.constant 0 : i32
    %c0_i32_0 = arith.constant 0 : i32
    return %arg1, %c0_i32 : i32, i32
  }
  func.func @transform_2(%arg0: i32, %arg1: i32) -> (i32, i32) {
    %c0_i32 = arith.constant 0 : i32
    %c0_i32_0 = arith.constant 0 : i32
    %c0_i32_1 = arith.constant 0 : i32
    return %c0_i32, %c0_i32_0 : i32, i32
  }
  func.func @transform_3(%arg0: i32, %arg1: i32) -> (i32, i32) {
    %c0_i32 = arith.constant 0 : i32
    %c0_i32_0 = arith.constant 0 : i32
    %c0_i32_1 = arith.constant 0 : i32
    return %c0_i32, %c0_i32_0 : i32, i32
  }
  func.func @transform_4(%arg0: i32, %arg1: i32) -> (i32, i32) {
    %c0_i32 = arith.constant 0 : i32
    %c0_i32_0 = arith.constant 0 : i32
    %c0_i32_1 = arith.constant 0 : i32
    return %c0_i32, %c0_i32_0 : i32, i32
  }
  func.func @transform_5(%arg0: i32, %arg1: i32) -> (i32, i32) {
    %c0_i32 = arith.constant 0 : i32
    %c0_i32_0 = arith.constant 0 : i32
    %c0_i32_1 = arith.constant 0 : i32
    return %c0_i32, %c0_i32_0 : i32, i32
  }
  func.func @transform_6(%arg0: i32, %arg1: i32) -> (i32, i32) {
    %c0_i32 = arith.constant 0 : i32
    %c0_i32_0 = arith.constant 0 : i32
    %c0_i32_1 = arith.constant 0 : i32
    return %c0_i32, %c0_i32_0 : i32, i32
  }
  func.func @transform_7(%arg0: i32, %arg1: i32) -> (i32, i32) {
    %c0_i32 = arith.constant 0 : i32
    %c0_i32_0 = arith.constant 0 : i32
    return %arg0, %c0_i32 : i32, i32
  }
}

</mosaic_0001>

<llo_original>
// kernel: mlp_forward.1
$region0: #{mlp_forward.1}
  #allocation0 [shape = 'u32[]', space=smem, size = 0x4, offset = 0x4, fixed_abs, tag = 'smem constant byte address 0x4 - core index']
  #allocation1 [shape = 'u32[144,128]{1,0:T(1,128)}', space=vmem, size = 0x12000, scoped, tag = 'internal scratch']
  #allocation2 [shape = 'f32[8,512]{1,0:T(8,128)}', space=vmem, size = 0x4000, scoped, tag = 'scratch operand']
  %s0 = inlined_call_operand.hbm [shape: bf16[8,256], index: 0, kind: input, shape index: {}]
  %s1 = inlined_call_operand.hbm [shape: bf16[256,512], index: 1, kind: input, shape index: {}]
  %s2 = inlined_call_operand.hbm [shape: f32[1,512], index: 2, kind: input, shape index: {}]
  %s3 = inlined_call_operand.hbm [shape: bf16[512,1024], index: 3, kind: input, shape index: {}]
  %s4 = inlined_call_operand.hbm [shape: f32[1,1024], index: 4, kind: input, shape index: {}]
  %s5 = inlined_call_operand.hbm [shape: bf16[1024,128], index: 5, kind: input, shape index: {}]
  %s6 = inlined_call_operand.hbm [shape: f32[1,128], index: 6, kind: input, shape index: {}]
  %s7 = inlined_call_operand.hbm [shape: f32[8,128], index: 7, kind: output, shape index: {}]
  %s8 = sld [smem:[#allocation0]]
  $region74: #{mlp_forward.1} parent=0
    _
  %s10 = ssub.s32 1, %s8
  %s11 = scalar_select 0, %s10, %s8
  $region1: #{mlp_forward.1} parent=0
    #allocation3 [shape = 'u8[4096]{0}', space=vmem, size = 0x1000, scoped, tag = 'input window, operand 0, single buffered']
    #allocation4 [shape = 's32[1]{0}', space=sflag, size = 0x4, scoped, tag = 'scoped memory for mlp_forward.1']
    #allocation5 [shape = 's32[1]{0}', space=sflag, size = 0x4, scoped, tag = 'scoped memory for mlp_forward.1']
    #allocation6 [shape = 'u8[262144]{0}', space=vmem, size = 0x40000, scoped, tag = 'input window, operand 1, single buffered']
    #allocation7 [shape = 's32[1]{0}', space=sflag, size = 0x4, scoped, tag = 'scoped memory for mlp_forward.1']
    #allocation8 [shape = 'u8[2048]{0}', space=vmem, size = 0x800, scoped, tag = 'input window, operand 2, single buffered']
    #allocation9 [shape = 'u8[1048576]{0}', space=vmem, size = 0x100000, scoped, tag = 'input window, operand 3, single buffered']
    #allocation10 [shape = 's32[1]{0}', space=sflag, size = 0x4, scoped, tag = 'scoped memory for mlp_forward.1']
    #allocation11 [shape = 'u8[4096]{0}', space=vmem, size = 0x1000, scoped, tag = 'input window, operand 4, single buffered']
    #allocation12 [shape = 'u8[262144]{0}', space=vmem, size = 0x40000, scoped, tag = 'input window, operand 5, single buffered']
    #allocation13 [shape = 's32[1]{0}', space=sflag, size = 0x4, scoped, tag = 'scoped memory for mlp_forward.1']
    #allocation14 [shape = 'u8[512]{0}', space=vmem, size = 0x400, scoped, tag = 'input window, operand 6, single buffered']
    #allocation15 [shape = 'u8[4096]{0}', space=vmem, size = 0x1000, scoped, tag = 'output window, operand 0, single buffered']
    %12 = vsyncpa [#allocation4], 0
    %13 = vsyncpa [#allocation7], 0
    %14 = vsyncpa [#allocation10], 0
    %15 = vsyncpa [#allocation13], 0
    %16 = vsyncpa [#allocation5], 0
    // Predicated region
    $region2: #{mlp_forward.1} parent=1 // pred_check
      _
    $region3: #{mlp_forward.1} parent=1 // pred_check_branch
      %18 = sbr.rel (0) target = $region5
    $region4: #{mlp_forward.1} parent=1 // pred_region
      %s20 = ssub.s32 128, 128
      %21 = vsyncadd [#allocation4], %s20
      %s23 = sshll.u32 [#allocation3], 4
      %s24 = int_to_ptr.vmem [resolvable:$true] %s23
      %26 = dma.hbm_to_vmem [thread:$0]  %s0, 128, %s24, [#allocation4]
    $region5: #{mlp_forward.1} parent=1 // pred_fallthru
      _
    // Predicated region
    $region6: #{mlp_forward.1} parent=1 // pred_check
      _
    $region7: #{mlp_forward.1} parent=1 // pred_check_branch
      %28 = sbr.rel (0) target = $region9
    $region8: #{mlp_forward.1} parent=1 // pred_region
      %s30 = ssub.s32 8192, 8192
      %31 = vsyncadd [#allocation7], %s30
      %s32 = sshll.u32 [#allocation6], 4
      %s33 = int_to_ptr.vmem [resolvable:$true] %s32
      %38 = dma.hbm_to_vmem [thread:$0]  %s1, 8192, %s33, [#allocation7], 256, 256, 16
    $region9: #{mlp_forward.1} parent=1 // pred_fallthru
      _
    // Predicated region
    $region10: #{mlp_forward.1} parent=1 // pred_check
      _
    $region11: #{mlp_forward.1} parent=1 // pred_check_branch
      %40 = sbr.rel (0) target = $region13
    $region12: #{mlp_forward.1} parent=1 // pred_region
      %s42 = ssub.s32 64, 64
      %43 = vsyncadd [#allocation7], %s42
      %s45 = sshll.u32 [#allocation8], 4
      %s46 = int_to_ptr.vmem [resolvable:$true] %s45
      %48 = dma.hbm_to_vmem [thread:$0]  %s2, 64, %s46, [#allocation7]
    $region13: #{mlp_forward.1} parent=1 // pred_fallthru
      _
    // Predicated region
    $region14: #{mlp_forward.1} parent=1 // pred_check
      _
    $region15: #{mlp_forward.1} parent=1 // pred_check_branch
      %50 = sbr.rel (0) target = $region17
    $region16: #{mlp_forward.1} parent=1 // pred_region
      %s52 = ssub.s32 32768, 32768
      %53 = vsyncadd [#allocation10], %s52
      %s54 = sshll.u32 [#allocation9], 4
      %s55 = int_to_ptr.vmem [resolvable:$true] %s54
      %60 = dma.hbm_to_vmem [thread:$0]  %s3, 32768, %s55, [#allocation10], 512, 512, 32
    $region17: #{mlp_forward.1} parent=1 // pred_fallthru
      _
    // Predicated region
    $region18: #{mlp_forward.1} parent=1 // pred_check
      _
    $region19: #{mlp_forward.1} parent=1 // pred_check_branch
      %62 = sbr.rel (0) target = $region21
    $region20: #{mlp_forward.1} parent=1 // pred_region
      %s64 = ssub.s32 128, 128
      %65 = vsyncadd [#allocation10], %s64
      %s67 = sshll.u32 [#allocation11], 4
      %s68 = int_to_ptr.vmem [resolvable:$true] %s67
      %70 = dma.hbm_to_vmem [thread:$0]  %s4, 128, %s68, [#allocation10]
    $region21: #{mlp_forward.1} parent=1 // pred_fallthru
      _
    // Predicated region
    $region22: #{mlp_forward.1} parent=1 // pred_check
      _
    $region23: #{mlp_forward.1} parent=1 // pred_check_branch
      %72 = sbr.rel (0) target = $region25
    $region24: #{mlp_forward.1} parent=1 // pred_region
      %s74 = ssub.s32 8192, 8192
      %75 = vsyncadd [#allocation13], %s74
      %s76 = sshll.u32 [#allocation12], 4
      %s77 = int_to_ptr.vmem [resolvable:$true] %s76
      %82 = dma.hbm_to_vmem [thread:$0]  %s5, 8192, %s77, [#allocation13], 64, 64, 4
    $region25: #{mlp_forward.1} parent=1 // pred_fallthru
      _
    // Predicated region
    $region26: #{mlp_forward.1} parent=1 // pred_check
      _
    $region27: #{mlp_forward.1} parent=1 // pred_check_branch
      %84 = sbr.rel (0) target = $region29
    $region28: #{mlp_forward.1} parent=1 // pred_region
      %s86 = ssub.s32 16, 16
      %87 = vsyncadd [#allocation13], %s86
      %s89 = sshll.u32 [#allocation14], 4
      %s90 = int_to_ptr.vmem [resolvable:$true] %s89
      %92 = dma.hbm_to_vmem [thread:$0]  %s6, 16, %s90, [#allocation13]
    $region29: #{mlp_forward.1} parent=1 // pred_fallthru
      _
    // Predicated region
    $region30: #{mlp_forward.1} parent=1 // pred_check
      _
    $region31: #{mlp_forward.1} parent=1 // pred_check_branch
      %94 = sbr.rel (0) target = $region33
    $region32: #{mlp_forward.1} parent=1 // pred_region
      %95 = dma.done [#allocation4], 128
    $region33: #{mlp_forward.1} parent=1 // pred_fallthru
      _
    // Predicated region
    $region34: #{mlp_forward.1} parent=1 // pred_check
      _
    $region35: #{mlp_forward.1} parent=1 // pred_check_branch
      %97 = sbr.rel (0) target = $region37
    $region36: #{mlp_forward.1} parent=1 // pred_region
      %98 = dma.done [#allocation7], 8192
    $region37: #{mlp_forward.1} parent=1 // pred_fallthru
      _
    // Predicated region
    $region38: #{mlp_forward.1} parent=1 // pred_check
      _
    $region39: #{mlp_forward.1} parent=1 // pred_check_branch
      %100 = sbr.rel (0) target = $region41
    $region40: #{mlp_forward.1} parent=1 // pred_region
      %101 = dma.done [#allocation7], 64
    $region41: #{mlp_forward.1} parent=1 // pred_fallthru
      _
    // Predicated region
    $region42: #{mlp_forward.1} parent=1 // pred_check
      _
    $region43: #{mlp_forward.1} parent=1 // pred_check_branch
      %103 = sbr.rel (0) target = $region45
    $region44: #{mlp_forward.1} parent=1 // pred_region
      %104 = dma.done [#allocation10], 32768
    $region45: #{mlp_forward.1} parent=1 // pred_fallthru
      _
    // Predicated region
    $region46: #{mlp_forward.1} parent=1 // pred_check
      _
    $region47: #{mlp_forward.1} parent=1 // pred_check_branch
      %106 = sbr.rel (0) target = $region49
    $region48: #{mlp_forward.1} parent=1 // pred_region
      %107 = dma.done [#allocation10], 128
    $region49: #{mlp_forward.1} parent=1 // pred_fallthru
      _
    // Predicated region
    $region50: #{mlp_forward.1} parent=1 // pred_check
      _
    $region51: #{mlp_forward.1} parent=1 // pred_check_branch
      %109 = sbr.rel (0) target = $region53
    $region52: #{mlp_forward.1} parent=1 // pred_region
      %110 = dma.done [#allocation13], 8192
    $region53: #{mlp_forward.1} parent=1 // pred_fallthru
      _
    // Predicated region
    $region54: #{mlp_forward.1} parent=1 // pred_check
      _
    $region55: #{mlp_forward.1} parent=1 // pred_check_branch
      %112 = sbr.rel (0) target = $region57
    $region56: #{mlp_forward.1} parent=1 // pred_region
      %113 = dma.done [#allocation13], 16
    $region57: #{mlp_forward.1} parent=1 // pred_fallthru
      _
    %p115 = scmp.eq.s32.totalorder 0, 0
    // Predicated region
    $region58: #{mlp_forward.1} parent=1 // pred_check
      %p116 = pneg %p115
    $region59: #{mlp_forward.1} parent=1 // pred_check_branch
      %118 = sbr.rel (%p116) target = $region61
    $region60: #{mlp_forward.1} parent=1 // pred_region
      %v119 = vld [vmem:[#allocation8] sm:$0xf]
      %v121 = vlaneseq
      %v122 = vshrl.u32 %v121, 7
      %v123 = vsub.s32 0, %v122
      %v124 = vrot.slane %v119, %v123
      %v125 = vlaneseq
      %v126 = vshrl.u32 %v125, 7
      %v127 = vsub.s32 1, %v126
      %v128 = vrot.slane %v119, %v127
      %v129 = vlaneseq
      %v130 = vshrl.u32 %v129, 7
      %v131 = vsub.s32 2, %v130
      %v132 = vrot.slane %v119, %v131
      %v133 = vlaneseq
      %v134 = vshrl.u32 %v133, 7
      %v135 = vsub.s32 3, %v134
      %v136 = vrot.slane %v119, %v135
      %141 = vst [vmem:[#allocation2] sm:$0xff] %v124
      %142 = vst [vmem:[#allocation2 + $0x8] sm:$0xff] %v128
      %143 = vst [vmem:[#allocation2 + $0x10] sm:$0xff] %v132
      %144 = vst [vmem:[#allocation2 + $0x18] sm:$0xff] %v136
    $region61: #{mlp_forward.1} parent=1 // pred_fallthru
      _
    %v145 = vld [vmem:[#allocation2] sm:$0xff]
    %v146 = vld [vmem:[#allocation2 + $0x8] sm:$0xff]
    %v147 = vld [vmem:[#allocation2 + $0x10] sm:$0xff]
    %v148 = vld [vmem:[#allocation2 + $0x18] sm:$0xff]
    %v149 = vld [vmem:[#allocation3] sm:$0xff]
    %v150 = vld [vmem:[#allocation6] sm:$0xff]
    %v151 = vld [vmem:[#allocation6 + $0x8] sm:$0xff]
    %v152 = vld [vmem:[#allocation6 + $0x10] sm:$0xff]
    %v153 = vld [vmem:[#allocation6 + $0x18] sm:$0xff]
    %v154 = vld [vmem:[#allocation6 + $0x20] sm:$0xff]
    %v155 = vld [vmem:[#allocation6 + $0x28] sm:$0xff]
    %v156 = vld [vmem:[#allocation6 + $0x30] sm:$0xff]
    %v157 = vld [vmem:[#allocation6 + $0x38] sm:$0xff]
    %v158 = vld [vmem:[#allocation6 + $0x40] sm:$0xff]
    %v159 = vld [vmem:[#allocation6 + $0x48] sm:$0xff]
    %v160 = vld [vmem:[#allocation6 + $0x50] sm:$0xff]
    %v161 = vld [vmem:[#allocation6 + $0x58] sm:$0xff]
    %v162 = vld [vmem:[#allocation6 + $0x60] sm:$0xff]
    %v163 = vld [vmem:[#allocation6 + $0x68] sm:$0xff]
    %v164 = vld [vmem:[#allocation6 + $0x70] sm:$0xff]
    %v165 = vld [vmem:[#allocation6 + $0x78] sm:$0xff]
    %v166 = vld [vmem:[#allocation6 + $0x80] sm:$0xff]
    %v167 = vld [vmem:[#allocation6 + $0x88] sm:$0xff]
    %v168 = vld [vmem:[#allocation6 + $0x90] sm:$0xff]
    %v169 = vld [vmem:[#allocation6 + $0x98] sm:$0xff]
    %v170 = vld [vmem:[#allocation6 + $0xa0] sm:$0xff]
    %v171 = vld [vmem:[#allocation6 + $0xa8] sm:$0xff]
    %v172 = vld [vmem:[#allocation6 + $0xb0] sm:$0xff]
    %v173 = vld [vmem:[#allocation6 + $0xb8] sm:$0xff]
    %v174 = vld [vmem:[#allocation6 + $0xc0] sm:$0xff]
    %v175 = vld [vmem:[#allocation6 + $0xc8] sm:$0xff]
    %v176 = vld [vmem:[#allocation6 + $0xd0] sm:$0xff]
    %v177 = vld [vmem:[#allocation6 + $0xd8] sm:$0xff]
    %v178 = vld [vmem:[#allocation6 + $0xe0] sm:$0xff]
    %v179 = vld [vmem:[#allocation6 + $0xe8] sm:$0xff]
    %v180 = vld [vmem:[#allocation6 + $0xf0] sm:$0xff]
    %v181 = vld [vmem:[#allocation6 + $0xf8] sm:$0xff]
    %v182 = vld [vmem:[#allocation6 + $0x100] sm:$0xff]
    %v183 = vld [vmem:[#allocation6 + $0x108] sm:$0xff]
    %v184 = vld [vmem:[#allocation6 + $0x110] sm:$0xff]
    %v185 = vld [vmem:[#allocation6 + $0x118] sm:$0xff]
    %v186 = vld [vmem:[#allocation6 + $0x120] sm:$0xff]
    %v187 = vld [vmem:[#allocation6 + $0x128] sm:$0xff]
    %v188 = vld [vmem:[#allocation6 + $0x130] sm:$0xff]
    %v189 = vld [vmem:[#allocation6 + $0x138] sm:$0xff]
    %v190 = vld [vmem:[#allocation6 + $0x140] sm:$0xff]
    %v191 = vld [vmem:[#allocation6 + $0x148] sm:$0xff]
    %v192 = vld [vmem:[#allocation6 + $0x150] sm:$0xff]
    %v193 = vld [vmem:[#allocation6 + $0x158] sm:$0xff]
    %v194 = vld [vmem:[#allocation6 + $0x160] sm:$0xff]
    %v195 = vld [vmem:[#allocation6 + $0x168] sm:$0xff]
    %v196 = vld [vmem:[#allocation6 + $0x170] sm:$0xff]
    %v197 = vld [vmem:[#allocation6 + $0x178] sm:$0xff]
    %v198 = vld [vmem:[#allocation6 + $0x180] sm:$0xff]
    %v199 = vld [vmem:[#allocation6 + $0x188] sm:$0xff]
    %v200 = vld [vmem:[#allocation6 + $0x190] sm:$0xff]
    %v201 = vld [vmem:[#allocation6 + $0x198] sm:$0xff]
    %v202 = vld [vmem:[#allocation6 + $0x1a0] sm:$0xff]
    %v203 = vld [vmem:[#allocation6 + $0x1a8] sm:$0xff]
    %v204 = vld [vmem:[#allocation6 + $0x1b0] sm:$0xff]
    %v205 = vld [vmem:[#allocation6 + $0x1b8] sm:$0xff]
    %v206 = vld [vmem:[#allocation6 + $0x1c0] sm:$0xff]
    %v207 = vld [vmem:[#allocation6 + $0x1c8] sm:$0xff]
    %v208 = vld [vmem:[#allocation6 + $0x1d0] sm:$0xff]
    %v209 = vld [vmem:[#allocation6 + $0x1d8] sm:$0xff]
    %v210 = vld [vmem:[#allocation6 + $0x1e0] sm:$0xff]
    %v211 = vld [vmem:[#allocation6 + $0x1e8] sm:$0xff]
    %v212 = vld [vmem:[#allocation6 + $0x1f0] sm:$0xff]
    %v213 = vld [vmem:[#allocation6 + $0x1f8] sm:$0xff]
    %v215 = vunpack.c.l.b16 %v149
    %v216 = vunpack.c.h.b16 %v149
    %v217 = vpack.c.b16 %v215, %v215
    %v218 = vpack.c.b16 %v216, %v216
    %v285 = vunpack.c.l.b16 %v150
    %v286 = vunpack.c.h.b16 %v150
    %v287 = vunpack.c.l.b16 %v151
    %v288 = vunpack.c.h.b16 %v151
    %v289 = vunpack.c.l.b16 %v152
    %v290 = vunpack.c.h.b16 %v152
    %v291 = vunpack.c.l.b16 %v153
    %v292 = vunpack.c.h.b16 %v153
    %v293 = vunpack.c.l.b16 %v154
    %v294 = vunpack.c.h.b16 %v154
    %v295 = vunpack.c.l.b16 %v155
    %v296 = vunpack.c.h.b16 %v155
    %v297 = vunpack.c.l.b16 %v156
    %v298 = vunpack.c.h.b16 %v156
    %v299 = vunpack.c.l.b16 %v157
    %v300 = vunpack.c.h.b16 %v157
    %v301 = vunpack.c.l.b16 %v158
    %v302 = vunpack.c.h.b16 %v158
    %v303 = vunpack.c.l.b16 %v159
    %v304 = vunpack.c.h.b16 %v159
    %v305 = vunpack.c.l.b16 %v160
    %v306 = vunpack.c.h.b16 %v160
    %v307 = vunpack.c.l.b16 %v161
    %v308 = vunpack.c.h.b16 %v161
    %v309 = vunpack.c.l.b16 %v162
    %v310 = vunpack.c.h.b16 %v162
    %v311 = vunpack.c.l.b16 %v163
    %v312 = vunpack.c.h.b16 %v163
    %v313 = vunpack.c.l.b16 %v164
    %v314 = vunpack.c.h.b16 %v164
    %v315 = vunpack.c.l.b16 %v165
    %v316 = vunpack.c.h.b16 %v165
    %v317 = vunpack.c.l.b16 %v166
    %v318 = vunpack.c.h.b16 %v166
    %v319 = vunpack.c.l.b16 %v167
    %v320 = vunpack.c.h.b16 %v167
    %v321 = vunpack.c.l.b16 %v168
    %v322 = vunpack.c.h.b16 %v168
    %v323 = vunpack.c.l.b16 %v169
    %v324 = vunpack.c.h.b16 %v169
    %v325 = vunpack.c.l.b16 %v170
    %v326 = vunpack.c.h.b16 %v170
    %v327 = vunpack.c.l.b16 %v171
    %v328 = vunpack.c.h.b16 %v171
    %v329 = vunpack.c.l.b16 %v172
    %v330 = vunpack.c.h.b16 %v172
    %v331 = vunpack.c.l.b16 %v173
    %v332 = vunpack.c.h.b16 %v173
    %v333 = vunpack.c.l.b16 %v174
    %v334 = vunpack.c.h.b16 %v174
    %v335 = vunpack.c.l.b16 %v175
    %v336 = vunpack.c.h.b16 %v175
    %v337 = vunpack.c.l.b16 %v176
    %v338 = vunpack.c.h.b16 %v176
    %v339 = vunpack.c.l.b16 %v177
    %v340 = vunpack.c.h.b16 %v177
    %v341 = vunpack.c.l.b16 %v178
    %v342 = vunpack.c.h.b16 %v178
    %v343 = vunpack.c.l.b16 %v179
    %v344 = vunpack.c.h.b16 %v179
    %v345 = vunpack.c.l.b16 %v180
    %v346 = vunpack.c.h.b16 %v180
    %v347 = vunpack.c.l.b16 %v181
    %v348 = vunpack.c.h.b16 %v181
    %v349 = vunpack.c.l.b16 %v182
    %v350 = vunpack.c.h.b16 %v182
    %v351 = vunpack.c.l.b16 %v183
    %v352 = vunpack.c.h.b16 %v183
    %v353 = vunpack.c.l.b16 %v184
    %v354 = vunpack.c.h.b16 %v184
    %v355 = vunpack.c.l.b16 %v185
    %v356 = vunpack.c.h.b16 %v185
    %v357 = vunpack.c.l.b16 %v186
    %v358 = vunpack.c.h.b16 %v186
    %v359 = vunpack.c.l.b16 %v187
    %v360 = vunpack.c.h.b16 %v187
    %v361 = vunpack.c.l.b16 %v188
    %v362 = vunpack.c.h.b16 %v188
    %v363 = vunpack.c.l.b16 %v189
    %v364 = vunpack.c.h.b16 %v189
    %v365 = vunpack.c.l.b16 %v190
    %v366 = vunpack.c.h.b16 %v190
    %v367 = vunpack.c.l.b16 %v191
    %v368 = vunpack.c.h.b16 %v191
    %v369 = vunpack.c.l.b16 %v192
    %v370 = vunpack.c.h.b16 %v192
    %v371 = vunpack.c.l.b16 %v193
    %v372 = vunpack.c.h.b16 %v193
    %v373 = vunpack.c.l.b16 %v194
    %v374 = vunpack.c.h.b16 %v194
    %v375 = vunpack.c.l.b16 %v195
    %v376 = vunpack.c.h.b16 %v195
    %v377 = vunpack.c.l.b16 %v196
    %v378 = vunpack.c.h.b16 %v196
    %v379 = vunpack.c.l.b16 %v197
    %v380 = vunpack.c.h.b16 %v197
    %v381 = vunpack.c.l.b16 %v198
    %v382 = vunpack.c.h.b16 %v198
    %v383 = vunpack.c.l.b16 %v199
    %v384 = vunpack.c.h.b16 %v199
    %v385 = vunpack.c.l.b16 %v200
    %v386 = vunpack.c.h.b16 %v200
    %v387 = vunpack.c.l.b16 %v201
    %v388 = vunpack.c.h.b16 %v201
    %v389 = vunpack.c.l.b16 %v202
    %v390 = vunpack.c.h.b16 %v202
    %v391 = vunpack.c.l.b16 %v203
    %v392 = vunpack.c.h.b16 %v203
    %v393 = vunpack.c.l.b16 %v204
    %v394 = vunpack.c.h.b16 %v204
    %v395 = vunpack.c.l.b16 %v205
    %v396 = vunpack.c.h.b16 %v205
    %v397 = vunpack.c.l.b16 %v206
    %v398 = vunpack.c.h.b16 %v206
    %v399 = vunpack.c.l.b16 %v207
    %v400 = vunpack.c.h.b16 %v207
    %v401 = vunpack.c.l.b16 %v208
    %v402 = vunpack.c.h.b16 %v208
    %v403 = vunpack.c.l.b16 %v209
    %v404 = vunpack.c.h.b16 %v209
    %v405 = vunpack.c.l.b16 %v210
    %v406 = vunpack.c.h.b16 %v210
    %v407 = vunpack.c.l.b16 %v211
    %v408 = vunpack.c.h.b16 %v211
    %v409 = vunpack.c.l.b16 %v212
    %v410 = vunpack.c.h.b16 %v212
    %v411 = vunpack.c.l.b16 %v213
    %v412 = vunpack.c.h.b16 %v213
    %v413 = vpack.c.b16 %v289, %v285
    %v414 = vpack.c.b16 %v290, %v286
    %v415 = vpack.c.b16 %v291, %v287
    %v416 = vpack.c.b16 %v292, %v288
    %v417 = vpack.c.b16 %v297, %v293
    %v418 = vpack.c.b16 %v298, %v294
    %v419 = vpack.c.b16 %v299, %v295
    %v420 = vpack.c.b16 %v300, %v296
    %v421 = vpack.c.b16 %v305, %v301
    %v422 = vpack.c.b16 %v306, %v302
    %v423 = vpack.c.b16 %v307, %v303
    %v424 = vpack.c.b16 %v308, %v304
    %v425 = vpack.c.b16 %v313, %v309
    %v426 = vpack.c.b16 %v314, %v310
    %v427 = vpack.c.b16 %v315, %v311
    %v428 = vpack.c.b16 %v316, %v312
    %v429 = vpack.c.b16 %v321, %v317
    %v430 = vpack.c.b16 %v322, %v318
    %v431 = vpack.c.b16 %v323, %v319
    %v432 = vpack.c.b16 %v324, %v320
    %v433 = vpack.c.b16 %v329, %v325
    %v434 = vpack.c.b16 %v330, %v326
    %v435 = vpack.c.b16 %v331, %v327
    %v436 = vpack.c.b16 %v332, %v328
    %v437 = vpack.c.b16 %v337, %v333
    %v438 = vpack.c.b16 %v338, %v334
    %v439 = vpack.c.b16 %v339, %v335
    %v440 = vpack.c.b16 %v340, %v336
    %v441 = vpack.c.b16 %v345, %v341
    %v442 = vpack.c.b16 %v346, %v342
    %v443 = vpack.c.b16 %v347, %v343
    %v444 = vpack.c.b16 %v348, %v344
    %v445 = vpack.c.b16 %v353, %v349
    %v446 = vpack.c.b16 %v354, %v350
    %v447 = vpack.c.b16 %v355, %v351
    %v448 = vpack.c.b16 %v356, %v352
    %v449 = vpack.c.b16 %v361, %v357
    %v450 = vpack.c.b16 %v362, %v358
    %v451 = vpack.c.b16 %v363, %v359
    %v452 = vpack.c.b16 %v364, %v360
    %v453 = vpack.c.b16 %v369, %v365
    %v454 = vpack.c.b16 %v370, %v366
    %v455 = vpack.c.b16 %v371, %v367
    %v456 = vpack.c.b16 %v372, %v368
    %v457 = vpack.c.b16 %v377, %v373
    %v458 = vpack.c.b16 %v378, %v374
    %v459 = vpack.c.b16 %v379, %v375
    %v460 = vpack.c.b16 %v380, %v376
    %v461 = vpack.c.b16 %v385, %v381
    %v462 = vpack.c.b16 %v386, %v382
    %v463 = vpack.c.b16 %v387, %v383
    %v464 = vpack.c.b16 %v388, %v384
    %v465 = vpack.c.b16 %v393, %v389
    %v466 = vpack.c.b16 %v394, %v390
    %v467 = vpack.c.b16 %v395, %v391
    %v468 = vpack.c.b16 %v396, %v392
    %v469 = vpack.c.b16 %v401, %v397
    %v470 = vpack.c.b16 %v402, %v398
    %v471 = vpack.c.b16 %v403, %v399
    %v472 = vpack.c.b16 %v404, %v400
    %v473 = vpack.c.b16 %v409, %v405
    %v474 = vpack.c.b16 %v410, %v406
    %v475 = vpack.c.b16 %v411, %v407
    %v476 = vpack.c.b16 %v412, %v408
    %541 = vmatprep.subr.bf16.mxu0 %v414
    %542 = vmatpush1.bf16.msra.mxu0 %v413
    %543 = vmatprep.subr.bf16.mxu0 %v418
    %544 = vmatpush1.bf16.msra.mxu0 %v417
    %545 = vmatprep.subr.bf16.mxu0 %v422
    %546 = vmatpush1.bf16.msra.mxu0 %v421
    %547 = vmatprep.subr.bf16.mxu0 %v426
    %548 = vmatpush1.bf16.msra.mxu0 %v425
    %549 = vmatprep.subr.bf16.mxu0 %v430
    %550 = vmatpush1.bf16.msra.mxu0 %v429
    %551 = vmatprep.subr.bf16.mxu0 %v434
    %552 = vmatpush1.bf16.msra.mxu0 %v433
    %553 = vmatprep.subr.bf16.mxu0 %v438
    %554 = vmatpush1.bf16.msra.mxu0 %v437
    %555 = vmatprep.subr.bf16.mxu0 %v442
    %556 = vmatpush1.bf16.msra.mxu0 %v441
    %557 = vmatprep.subr.bf16.mxu0 %v446
    %558 = vmatpush1.bf16.msra.mxu0 %v445
    %559 = vmatprep.subr.bf16.mxu0 %v450
    %560 = vmatpush1.bf16.msra.mxu0 %v449
    %561 = vmatprep.subr.bf16.mxu0 %v454
    %562 = vmatpush1.bf16.msra.mxu0 %v453
    %563 = vmatprep.subr.bf16.mxu0 %v458
    %564 = vmatpush1.bf16.msra.mxu0 %v457
    %565 = vmatprep.subr.bf16.mxu0 %v462
    %566 = vmatpush1.bf16.msra.mxu0 %v461
    %567 = vmatprep.subr.bf16.mxu0 %v466
    %568 = vmatpush1.bf16.msra.mxu0 %v465
    %569 = vmatprep.subr.bf16.mxu0 %v470
    %570 = vmatpush1.bf16.msra.mxu0 %v469
    %571 = vmatprep.subr.bf16.mxu0 %v474
    %572 = vmatpush1.bf16.msra.mxu0 %v473
    %573 = vmatprep.mubr.bf16.mxu0 %v218
    %574 = vmatmul.mubr.bf16.gmra.mrb[0].mxu0 %v217
    %v575 = vpop.f32.mrb[0].mxu0
    %v576 = vadd.f32 0.0, %v575
    %v577 = vpop.f32.mrb[0].mxu0
    %v578 = vadd.f32 0.0, %v577
    %v579 = vpop.f32.mrb[0].mxu0
    %v580 = vpop.f32.mrb[0].mxu0
    %581 = vdwg.mxu0
    %582 = vmatprep.subr.bf16.mxu0 %v416
    %583 = vmatpush1.bf16.msra.mxu0 %v415
    %584 = vmatprep.subr.bf16.mxu0 %v420
    %585 = vmatpush1.bf16.msra.mxu0 %v419
    %586 = vmatprep.subr.bf16.mxu0 %v424
    %587 = vmatpush1.bf16.msra.mxu0 %v423
    %588 = vmatprep.subr.bf16.mxu0 %v428
    %589 = vmatpush1.bf16.msra.mxu0 %v427
    %590 = vmatprep.subr.bf16.mxu0 %v432
    %591 = vmatpush1.bf16.msra.mxu0 %v431
    %592 = vmatprep.subr.bf16.mxu0 %v436
    %593 = vmatpush1.bf16.msra.mxu0 %v435
    %594 = vmatprep.subr.bf16.mxu0 %v440
    %595 = vmatpush1.bf16.msra.mxu0 %v439
    %596 = vmatprep.subr.bf16.mxu0 %v444
    %597 = vmatpush1.bf16.msra.mxu0 %v443
    %598 = vmatprep.subr.bf16.mxu0 %v448
    %599 = vmatpush1.bf16.msra.mxu0 %v447
    %600 = vmatprep.subr.bf16.mxu0 %v452
    %601 = vmatpush1.bf16.msra.mxu0 %v451
    %602 = vmatprep.subr.bf16.mxu0 %v456
    %603 = vmatpush1.bf16.msra.mxu0 %v455
    %604 = vmatprep.subr.bf16.mxu0 %v460
    %605 = vmatpush1.bf16.msra.mxu0 %v459
    %606 = vmatprep.subr.bf16.mxu0 %v464
    %607 = vmatpush1.bf16.msra.mxu0 %v463
    %608 = vmatprep.subr.bf16.mxu0 %v468
    %609 = vmatpush1.bf16.msra.mxu0 %v467
    %610 = vmatprep.subr.bf16.mxu0 %v472
    %611 = vmatpush1.bf16.msra.mxu0 %v471
    %612 = vmatprep.subr.bf16.mxu0 %v476
    %613 = vmatpush1.bf16.msra.mxu0 %v475
    %614 = vmatprep.mubr.bf16.mxu0 %v218
    %615 = vmatmul.mubr.bf16.gmra.mrb[0].mxu0 %v217
    %v616 = vpop.f32.mrb[0].mxu0
    %v617 = vadd.f32 0.0, %v616
    %v618 = vpop.f32.mrb[0].mxu0
    %v619 = vadd.f32 0.0, %v618
    %v620 = vpop.f32.mrb[0].mxu0
    %v621 = vpop.f32.mrb[0].mxu0
    %622 = vdwg.mxu0
    %v623 = vadd.f32 %v145, %v576
    %v624 = vadd.f32 %v146, %v578
    %v625 = vadd.f32 %v147, %v617
    %v626 = vadd.f32 %v148, %v619
    %627 = vst [vmem:[#allocation2] sm:$0xff] %v623
    %628 = vst [vmem:[#allocation2 + $0x8] sm:$0xff] %v624
    %629 = vst [vmem:[#allocation2 + $0x10] sm:$0xff] %v625
    %630 = vst [vmem:[#allocation2 + $0x18] sm:$0xff] %v626
    // Predicated region
    $region62: #{mlp_forward.1} parent=1 // pred_check
      %p631 = pneg %p115
    $region63: #{mlp_forward.1} parent=1 // pred_check_branch
      %633 = sbr.rel (%p631) target = $region65
    $region64: #{mlp_forward.1} parent=1 // pred_region
      %v634 = vld [vmem:[#allocation2] sm:$0xff]
      %v635 = vld [vmem:[#allocation2 + $0x8] sm:$0xff]
      %v636 = vld [vmem:[#allocation2 + $0x10] sm:$0xff]
      %v637 = vld [vmem:[#allocation2 + $0x18] sm:$0xff]
      %v638 = vmax.f32 %v634, 0.0
      %v639 = vmax.f32 %v635, 0.0
      %v640 = vmax.f32 %v636, 0.0
      %v641 = vmax.f32 %v637, 0.0
      %v642 = vpack.c.bf16 %v638, %v638
      %v643 = vpack.c.bf16 %v639, %v639
      %v644 = vpack.c.bf16 %v640, %v640
      %v645 = vpack.c.bf16 %v641, %v641
      %v646 = vld [vmem:[#allocation9] sm:$0xff]
      %v647 = vld [vmem:[#allocation9 + $0x8] sm:$0xff]
      %v648 = vld [vmem:[#allocation9 + $0x10] sm:$0xff]
      %v649 = vld [vmem:[#allocation9 + $0x18] sm:$0xff]
      %v650 = vld [vmem:[#allocation9 + $0x20] sm:$0xff]
      %v651 = vld [vmem:[#allocation9 + $0x28] sm:$0xff]
      %v652 = vld [vmem:[#allocation9 + $0x30] sm:$0xff]
      %v653 = vld [vmem:[#allocation9 + $0x38] sm:$0xff]
      %v654 = vld [vmem:[#allocation9 + $0x40] sm:$0xff]
      %v655 = vld [vmem:[#allocation9 + $0x48] sm:$0xff]
      %v656 = vld [vmem:[#allocation9 + $0x50] sm:$0xff]
      %v657 = vld [vmem:[#allocation9 + $0x58] sm:$0xff]
      %v658 = vld [vmem:[#allocation9 + $0x60] sm:$0xff]
      %v659 = vld [vmem:[#allocation9 + $0x68] sm:$0xff]
      %v660 = vld [vmem:[#allocation9 + $0x70] sm:$0xff]
      %v661 = vld [vmem:[#allocation9 + $0x78] sm:$0xff]
      %v662 = vld [vmem:[#allocation9 + $0x80] sm:$0xff]
      %v663 = vld [vmem:[#allocation9 + $0x88] sm:$0xff]
      %v664 = vld [vmem:[#allocation9 + $0x90] sm:$0xff]
      %v665 = vld [vmem:[#allocation9 + $0x98] sm:$0xff]
      %v666 = vld [vmem:[#allocation9 + $0xa0] sm:$0xff]
      %v667 = vld [vmem:[#allocation9 + $0xa8] sm:$0xff]
      %v668 = vld [vmem:[#allocation9 + $0xb0] sm:$0xff]
      %v669 = vld [vmem:[#allocation9 + $0xb8] sm:$0xff]
      %v670 = vld [vmem:[#allocation9 + $0xc0] sm:$0xff]
      %v671 = vld [vmem:[#allocation9 + $0xc8] sm:$0xff]
      %v672 = vld [vmem:[#allocation9 + $0xd0] sm:$0xff]
      %v673 = vld [vmem:[#allocation9 + $0xd8] sm:$0xff]
      %v674 = vld [vmem:[#allocation9 + $0xe0] sm:$0xff]
      %v675 = vld [vmem:[#allocation9 + $0xe8] sm:$0xff]
      %v676 = vld [vmem:[#allocation9 + $0xf0] sm:$0xff]
      %v677 = vld [vmem:[#allocation9 + $0xf8] sm:$0xff]
      %v678 = vld [vmem:[#allocation9 + $0x100] sm:$0xff]
      %v679 = vld [vmem:[#allocation9 + $0x108] sm:$0xff]
      %v680 = vld [vmem:[#allocation9 + $0x110] sm:$0xff]
      %v681 = vld [vmem:[#allocation9 + $0x118] sm:$0xff]
      %v682 = vld [vmem:[#allocation9 + $0x120] sm:$0xff]
      %v683 = vld [vmem:[#allocation9 + $0x128] sm:$0xff]
      %v684 = vld [vmem:[#allocation9 + $0x130] sm:$0xff]
      %v685 = vld [vmem:[#allocation9 + $0x138] sm:$0xff]
      %v686 = vld [vmem:[#allocation9 + $0x140] sm:$0xff]
      %v687 = vld [vmem:[#allocation9 + $0x148] sm:$0xff]
      %v688 = vld [vmem:[#allocation9 + $0x150] sm:$0xff]
      %v689 = vld [vmem:[#allocation9 + $0x158] sm:$0xff]
      %v690 = vld [vmem:[#allocation9 + $0x160] sm:$0xff]
      %v691 = vld [vmem:[#allocation9 + $0x168] sm:$0xff]
      %v692 = vld [vmem:[#allocation9 + $0x170] sm:$0xff]
      %v693 = vld [vmem:[#allocation9 + $0x178] sm:$0xff]
      %v694 = vld [vmem:[#allocation9 + $0x180] sm:$0xff]
      %v695 = vld [vmem:[#allocation9 + $0x188] sm:$0xff]
      %v696 = vld [vmem:[#allocation9 + $0x190] sm:$0xff]
      %v697 = vld [vmem:[#allocation9 + $0x198] sm:$0xff]
      %v698 = vld [vmem:[#allocation9 + $0x1a0] sm:$0xff]
      %v699 = vld [vmem:[#allocation9 + $0x1a8] sm:$0xff]
      %v700 = vld [vmem:[#allocation9 + $0x1b0] sm:$0xff]
      %v701 = vld [vmem:[#allocation9 + $0x1b8] sm:$0xff]
      %v702 = vld [vmem:[#allocation9 + $0x1c0] sm:$0xff]
      %v703 = vld [vmem:[#allocation9 + $0x1c8] sm:$0xff]
      %v704 = vld [vmem:[#allocation9 + $0x1d0] sm:$0xff]
      %v705 = vld [vmem:[#allocation9 + $0x1d8] sm:$0xff]
      %v706 = vld [vmem:[#allocation9 + $0x1e0] sm:$0xff]
      %v707 = vld [vmem:[#allocation9 + $0x1e8] sm:$0xff]
      %v708 = vld [vmem:[#allocation9 + $0x1f0] sm:$0xff]
      %v709 = vld [vmem:[#allocation9 + $0x1f8] sm:$0xff]
      %v710 = vld [vmem:[#allocation9 + $0x200] sm:$0xff]
      %v711 = vld [vmem:[#allocation9 + $0x208] sm:$0xff]
      %v712 = vld [vmem:[#allocation9 + $0x210] sm:$0xff]
      %v713 = vld [vmem:[#allocation9 + $0x218] sm:$0xff]
      %v714 = vld [vmem:[#allocation9 + $0x220] sm:$0xff]
      %v715 = vld [vmem:[#allocation9 + $0x228] sm:$0xff]
      %v716 = vld [vmem:[#allocation9 + $0x230] sm:$0xff]
      %v717 = vld [vmem:[#allocation9 + $0x238] sm:$0xff]
      %v718 = vld [vmem:[#allocation9 + $0x240] sm:$0xff]
      %v719 = vld [vmem:[#allocation9 + $0x248] sm:$0xff]
      %v720 = vld [vmem:[#allocation9 + $0x250] sm:$0xff]
      %v721 = vld [vmem:[#allocation9 + $0x258] sm:$0xff]
      %v722 = vld [vmem:[#allocation9 + $0x260] sm:$0xff]
      %v723 = vld [vmem:[#allocation9 + $0x268] sm:$0xff]
      %v724 = vld [vmem:[#allocation9 + $0x270] sm:$0xff]
      %v725 = vld [vmem:[#allocation9 + $0x278] sm:$0xff]
      %v726 = vld [vmem:[#allocation9 + $0x280] sm:$0xff]
      %v727 = vld [vmem:[#allocation9 + $0x288] sm:$0xff]
      %v728 = vld [vmem:[#allocation9 + $0x290] sm:$0xff]
      %v729 = vld [vmem:[#allocation9 + $0x298] sm:$0xff]
      %v730 = vld [vmem:[#allocation9 + $0x2a0] sm:$0xff]
      %v731 = vld [vmem:[#allocation9 + $0x2a8] sm:$0xff]
      %v732 = vld [vmem:[#allocation9 + $0x2b0] sm:$0xff]
      %v733 = vld [vmem:[#allocation9 + $0x2b8] sm:$0xff]
      %v734 = vld [vmem:[#allocation9 + $0x2c0] sm:$0xff]
      %v735 = vld [vmem:[#allocation9 + $0x2c8] sm:$0xff]
      %v736 = vld [vmem:[#allocation9 + $0x2d0] sm:$0xff]
      %v737 = vld [vmem:[#allocation9 + $0x2d8] sm:$0xff]
      %v738 = vld [vmem:[#allocation9 + $0x2e0] sm:$0xff]
      %v739 = vld [vmem:[#allocation9 + $0x2e8] sm:$0xff]
      %v740 = vld [vmem:[#allocation9 + $0x2f0] sm:$0xff]
      %v741 = vld [vmem:[#allocation9 + $0x2f8] sm:$0xff]
      %v742 = vld [vmem:[#allocation9 + $0x300] sm:$0xff]
      %v743 = vld [vmem:[#allocation9 + $0x308] sm:$0xff]
      %v744 = vld [vmem:[#allocation9 + $0x310] sm:$0xff]
      %v745 = vld [vmem:[#allocation9 + $0x318] sm:$0xff]
      %v746 = vld [vmem:[#allocation9 + $0x320] sm:$0xff]
      %v747 = vld [vmem:[#allocation9 + $0x328] sm:$0xff]
      %v748 = vld [vmem:[#allocation9 + $0x330] sm:$0xff]
      %v749 = vld [vmem:[#allocation9 + $0x338] sm:$0xff]
      %v750 = vld [vmem:[#allocation9 + $0x340] sm:$0xff]
      %v751 = vld [vmem:[#allocation9 + $0x348] sm:$0xff]
      %v752 = vld [vmem:[#allocation9 + $0x350] sm:$0xff]
      %v753 = vld [vmem:[#allocation9 + $0x358] sm:$0xff]
      %v754 = vld [vmem:[#allocation9 + $0x360] sm:$0xff]
      %v755 = vld [vmem:[#allocation9 + $0x368] sm:$0xff]
      %v756 = vld [vmem:[#allocation9 + $0x370] sm:$0xff]
      %v757 = vld [vmem:[#allocation9 + $0x378] sm:$0xff]
      %v758 = vld [vmem:[#allocation9 + $0x380] sm:$0xff]
      %v759 = vld [vmem:[#allocation9 + $0x388] sm:$0xff]
      %v760 = vld [vmem:[#allocation9 + $0x390] sm:$0xff]
      %v761 = vld [vmem:[#allocation9 + $0x398] sm:$0xff]
      %v762 = vld [vmem:[#allocation9 + $0x3a0] sm:$0xff]
      %v763 = vld [vmem:[#allocation9 + $0x3a8] sm:$0xff]
      %v764 = vld [vmem:[#allocation9 + $0x3b0] sm:$0xff]
      %v765 = vld [vmem:[#allocation9 + $0x3b8] sm:$0xff]
      %v766 = vld [vmem:[#allocation9 + $0x3c0] sm:$0xff]
      %v767 = vld [vmem:[#allocation9 + $0x3c8] sm:$0xff]
      %v768 = vld [vmem:[#allocation9 + $0x3d0] sm:$0xff]
      %v769 = vld [vmem:[#allocation9 + $0x3d8] sm:$0xff]
      %v770 = vld [vmem:[#allocation9 + $0x3e0] sm:$0xff]
      %v771 = vld [vmem:[#allocation9 + $0x3e8] sm:$0xff]
      %v772 = vld [vmem:[#allocation9 + $0x3f0] sm:$0xff]
      %v773 = vld [vmem:[#allocation9 + $0x3f8] sm:$0xff]
      %v774 = vld [vmem:[#allocation9 + $0x400] sm:$0xff]
      %v775 = vld [vmem:[#allocation9 + $0x408] sm:$0xff]
      %v776 = vld [vmem:[#allocation9 + $0x410] sm:$0xff]
      %v777 = vld [vmem:[#allocation9 + $0x418] sm:$0xff]
      %v778 = vld [vmem:[#allocation9 + $0x420] sm:$0xff]
      %v779 = vld [vmem:[#allocation9 + $0x428] sm:$0xff]
      %v780 = vld [vmem:[#allocation9 + $0x430] sm:$0xff]
      %v781 = vld [vmem:[#allocation9 + $0x438] sm:$0xff]
      %v782 = vld [vmem:[#allocation9 + $0x440] sm:$0xff]
      %v783 = vld [vmem:[#allocation9 + $0x448] sm:$0xff]
      %v784 = vld [vmem:[#allocation9 + $0x450] sm:$0xff]
      %v785 = vld [vmem:[#allocation9 + $0x458] sm:$0xff]
      %v786 = vld [vmem:[#allocation9 + $0x460] sm:$0xff]
      %v787 = vld [vmem:[#allocation9 + $0x468] sm:$0xff]
      %v788 = vld [vmem:[#allocation9 + $0x470] sm:$0xff]
      %v789 = vld [vmem:[#allocation9 + $0x478] sm:$0xff]
      %v790 = vld [vmem:[#allocation9 + $0x480] sm:$0xff]
      %v791 = vld [vmem:[#allocation9 + $0x488] sm:$0xff]
      %v792 = vld [vmem:[#allocation9 + $0x490] sm:$0xff]
      %v793 = vld [vmem:[#allocation9 + $0x498] sm:$0xff]
      %v794 = vld [vmem:[#allocation9 + $0x4a0] sm:$0xff]
      %v795 = vld [vmem:[#allocation9 + $0x4a8] sm:$0xff]
      %v796 = vld [vmem:[#allocation9 + $0x4b0] sm:$0xff]
      %v797 = vld [vmem:[#allocation9 + $0x4b8] sm:$0xff]
      %v798 = vld [vmem:[#allocation9 + $0x4c0] sm:$0xff]
      %v799 = vld [vmem:[#allocation9 + $0x4c8] sm:$0xff]
      %v800 = vld [vmem:[#allocation9 + $0x4d0] sm:$0xff]
      %v801 = vld [vmem:[#allocation9 + $0x4d8] sm:$0xff]
      %v802 = vld [vmem:[#allocation9 + $0x4e0] sm:$0xff]
      %v803 = vld [vmem:[#allocation9 + $0x4e8] sm:$0xff]
      %v804 = vld [vmem:[#allocation9 + $0x4f0] sm:$0xff]
      %v805 = vld [vmem:[#allocation9 + $0x4f8] sm:$0xff]
      %v806 = vld [vmem:[#allocation9 + $0x500] sm:$0xff]
      %v807 = vld [vmem:[#allocation9 + $0x508] sm:$0xff]
      %v808 = vld [vmem:[#allocation9 + $0x510] sm:$0xff]
      %v809 = vld [vmem:[#allocation9 + $0x518] sm:$0xff]
      %v810 = vld [vmem:[#allocation9 + $0x520] sm:$0xff]
      %v811 = vld [vmem:[#allocation9 + $0x528] sm:$0xff]
      %v812 = vld [vmem:[#allocation9 + $0x530] sm:$0xff]
      %v813 = vld [vmem:[#allocation9 + $0x538] sm:$0xff]
      %v814 = vld [vmem:[#allocation9 + $0x540] sm:$0xff]
      %v815 = vld [vmem:[#allocation9 + $0x548] sm:$0xff]
      %v816 = vld [vmem:[#allocation9 + $0x550] sm:$0xff]
      %v817 = vld [vmem:[#allocation9 + $0x558] sm:$0xff]
      %v818 = vld [vmem:[#allocation9 + $0x560] sm:$0xff]
      %v819 = vld [vmem:[#allocation9 + $0x568] sm:$0xff]
      %v820 = vld [vmem:[#allocation9 + $0x570] sm:$0xff]
      %v821 = vld [vmem:[#allocation9 + $0x578] sm:$0xff]
      %v822 = vld [vmem:[#allocation9 + $0x580] sm:$0xff]
      %v823 = vld [vmem:[#allocation9 + $0x588] sm:$0xff]
      %v824 = vld [vmem:[#allocation9 + $0x590] sm:$0xff]
      %v825 = vld [vmem:[#allocation9 + $0x598] sm:$0xff]
      %v826 = vld [vmem:[#allocation9 + $0x5a0] sm:$0xff]
      %v827 = vld [vmem:[#allocation9 + $0x5a8] sm:$0xff]
      %v828 = vld [vmem:[#allocation9 + $0x5b0] sm:$0xff]
      %v829 = vld [vmem:[#allocation9 + $0x5b8] sm:$0xff]
      %v830 = vld [vmem:[#allocation9 + $0x5c0] sm:$0xff]
      %v831 = vld [vmem:[#allocation9 + $0x5c8] sm:$0xff]
      %v832 = vld [vmem:[#allocation9 + $0x5d0] sm:$0xff]
      %v833 = vld [vmem:[#allocation9 + $0x5d8] sm:$0xff]
      %v834 = vld [vmem:[#allocation9 + $0x5e0] sm:$0xff]
      %v835 = vld [vmem:[#allocation9 + $0x5e8] sm:$0xff]
      %v836 = vld [vmem:[#allocation9 + $0x5f0] sm:$0xff]
      %v837 = vld [vmem:[#allocation9 + $0x5f8] sm:$0xff]
      %v838 = vld [vmem:[#allocation9 + $0x600] sm:$0xff]
      %v839 = vld [vmem:[#allocation9 + $0x608] sm:$0xff]
      %v840 = vld [vmem:[#allocation9 + $0x610] sm:$0xff]
      %v841 = vld [vmem:[#allocation9 + $0x618] sm:$0xff]
      %v842 = vld [vmem:[#allocation9 + $0x620] sm:$0xff]
      %v843 = vld [vmem:[#allocation9 + $0x628] sm:$0xff]
      %v844 = vld [vmem:[#allocation9 + $0x630] sm:$0xff]
      %v845 = vld [vmem:[#allocation9 + $0x638] sm:$0xff]
      %v846 = vld [vmem:[#allocation9 + $0x640] sm:$0xff]
      %v847 = vld [vmem:[#allocation9 + $0x648] sm:$0xff]
      %v848 = vld [vmem:[#allocation9 + $0x650] sm:$0xff]
      %v849 = vld [vmem:[#allocation9 + $0x658] sm:$0xff]
      %v850 = vld [vmem:[#allocation9 + $0x660] sm:$0xff]
      %v851 = vld [vmem:[#allocation9 + $0x668] sm:$0xff]
      %v852 = vld [vmem:[#allocation9 + $0x670] sm:$0xff]
      %v853 = vld [vmem:[#allocation9 + $0x678] sm:$0xff]
      %v854 = vld [vmem:[#allocation9 + $0x680] sm:$0xff]
      %v855 = vld [vmem:[#allocation9 + $0x688] sm:$0xff]
      %v856 = vld [vmem:[#allocation9 + $0x690] sm:$0xff]
      %v857 = vld [vmem:[#allocation9 + $0x698] sm:$0xff]
      %v858 = vld [vmem:[#allocation9 + $0x6a0] sm:$0xff]
      %v859 = vld [vmem:[#allocation9 + $0x6a8] sm:$0xff]
      %v860 = vld [vmem:[#allocation9 + $0x6b0] sm:$0xff]
      %v861 = vld [vmem:[#allocation9 + $0x6b8] sm:$0xff]
      %v862 = vld [vmem:[#allocation9 + $0x6c0] sm:$0xff]
      %v863 = vld [vmem:[#allocation9 + $0x6c8] sm:$0xff]
      %v864 = vld [vmem:[#allocation9 + $0x6d0] sm:$0xff]
      %v865 = vld [vmem:[#allocation9 + $0x6d8] sm:$0xff]
      %v866 = vld [vmem:[#allocation9 + $0x6e0] sm:$0xff]
      %v867 = vld [vmem:[#allocation9 + $0x6e8] sm:$0xff]
      %v868 = vld [vmem:[#allocation9 + $0x6f0] sm:$0xff]
      %v869 = vld [vmem:[#allocation9 + $0x6f8] sm:$0xff]
      %v870 = vld [vmem:[#allocation9 + $0x700] sm:$0xff]
      %v871 = vld [vmem:[#allocation9 + $0x708] sm:$0xff]
      %v872 = vld [vmem:[#allocation9 + $0x710] sm:$0xff]
      %v873 = vld [vmem:[#allocation9 + $0x718] sm:$0xff]
      %v874 = vld [vmem:[#allocation9 + $0x720] sm:$0xff]
      %v875 = vld [vmem:[#allocation9 + $0x728] sm:$0xff]
      %v876 = vld [vmem:[#allocation9 + $0x730] sm:$0xff]
      %v877 = vld [vmem:[#allocation9 + $0x738] sm:$0xff]
      %v878 = vld [vmem:[#allocation9 + $0x740] sm:$0xff]
      %v879 = vld [vmem:[#allocation9 + $0x748] sm:$0xff]
      %v880 = vld [vmem:[#allocation9 + $0x750] sm:$0xff]
      %v881 = vld [vmem:[#allocation9 + $0x758] sm:$0xff]
      %v882 = vld [vmem:[#allocation9 + $0x760] sm:$0xff]
      %v883 = vld [vmem:[#allocation9 + $0x768] sm:$0xff]
      %v884 = vld [vmem:[#allocation9 + $0x770] sm:$0xff]
      %v885 = vld [vmem:[#allocation9 + $0x778] sm:$0xff]
      %v886 = vld [vmem:[#allocation9 + $0x780] sm:$0xff]
      %v887 = vld [vmem:[#allocation9 + $0x788] sm:$0xff]
      %v888 = vld [vmem:[#allocation9 + $0x790] sm:$0xff]
      %v889 = vld [vmem:[#allocation9 + $0x798] sm:$0xff]
      %v890 = vld [vmem:[#allocation9 + $0x7a0] sm:$0xff]
      %v891 = vld [vmem:[#allocation9 + $0x7a8] sm:$0xff]
      %v892 = vld [vmem:[#allocation9 + $0x7b0] sm:$0xff]
      %v893 = vld [vmem:[#allocation9 + $0x7b8] sm:$0xff]
      %v894 = vld [vmem:[#allocation9 + $0x7c0] sm:$0xff]
      %v895 = vld [vmem:[#allocation9 + $0x7c8] sm:$0xff]
      %v896 = vld [vmem:[#allocation9 + $0x7d0] sm:$0xff]
      %v897 = vld [vmem:[#allocation9 + $0x7d8] sm:$0xff]
      %v898 = vld [vmem:[#allocation9 + $0x7e0] sm:$0xff]
      %v899 = vld [vmem:[#allocation9 + $0x7e8] sm:$0xff]
      %v900 = vld [vmem:[#allocation9 + $0x7f0] sm:$0xff]
      %v901 = vld [vmem:[#allocation9 + $0x7f8] sm:$0xff]
      %v902 = vld [vmem:[#allocation11] sm:$0xff]
      %v904 = vlaneseq
      %v905 = vshrl.u32 %v904, 7
      %v906 = vsub.s32 0, %v905
      %v907 = vrot.slane %v902, %v906
      %v908 = vlaneseq
      %v909 = vshrl.u32 %v908, 7
      %v910 = vsub.s32 1, %v909
      %v911 = vrot.slane %v902, %v910
      %v912 = vlaneseq
      %v913 = vshrl.u32 %v912, 7
      %v914 = vsub.s32 2, %v913
      %v915 = vrot.slane %v902, %v914
      %v916 = vlaneseq
      %v917 = vshrl.u32 %v916, 7
      %v918 = vsub.s32 3, %v917
      %v919 = vrot.slane %v902, %v918
      %v920 = vlaneseq
      %v921 = vshrl.u32 %v920, 7
      %v922 = vsub.s32 4, %v921
      %v923 = vrot.slane %v902, %v922
      %v924 = vlaneseq
      %v925 = vshrl.u32 %v924, 7
      %v926 = vsub.s32 5, %v925
      %v927 = vrot.slane %v902, %v926
      %v928 = vlaneseq
      %v929 = vshrl.u32 %v928, 7
      %v930 = vsub.s32 6, %v929
      %v931 = vrot.slane %v902, %v930
      %v932 = vlaneseq
      %v933 = vshrl.u32 %v932, 7
      %v934 = vsub.s32 7, %v933
      %v935 = vrot.slane %v902, %v934
      %v1200 = vunpack.c.l.b16 %v646
      %v1201 = vunpack.c.h.b16 %v646
      %v1202 = vunpack.c.l.b16 %v647
      %v1203 = vunpack.c.h.b16 %v647
      %v1204 = vunpack.c.l.b16 %v648
      %v1205 = vunpack.c.h.b16 %v648
      %v1206 = vunpack.c.l.b16 %v649
      %v1207 = vunpack.c.h.b16 %v649
      %v1208 = vunpack.c.l.b16 %v650
      %v1209 = vunpack.c.h.b16 %v650
      %v1210 = vunpack.c.l.b16 %v651
      %v1211 = vunpack.c.h.b16 %v651
      %v1212 = vunpack.c.l.b16 %v652
      %v1213 = vunpack.c.h.b16 %v652
      %v1214 = vunpack.c.l.b16 %v653
      %v1215 = vunpack.c.h.b16 %v653
      %v1216 = vunpack.c.l.b16 %v654
      %v1217 = vunpack.c.h.b16 %v654
      %v1218 = vunpack.c.l.b16 %v655
      %v1219 = vunpack.c.h.b16 %v655
      %v1220 = vunpack.c.l.b16 %v656
      %v1221 = vunpack.c.h.b16 %v656
      %v1222 = vunpack.c.l.b16 %v657
      %v1223 = vunpack.c.h.b16 %v657
      %v1224 = vunpack.c.l.b16 %v658
      %v1225 = vunpack.c.h.b16 %v658
      %v1226 = vunpack.c.l.b16 %v659
      %v1227 = vunpack.c.h.b16 %v659
      %v1228 = vunpack.c.l.b16 %v660
      %v1229 = vunpack.c.h.b16 %v660
      %v1230 = vunpack.c.l.b16 %v661
      %v1231 = vunpack.c.h.b16 %v661
      %v1232 = vunpack.c.l.b16 %v662
      %v1233 = vunpack.c.h.b16 %v662
      %v1234 = vunpack.c.l.b16 %v663
      %v1235 = vunpack.c.h.b16 %v663
      %v1236 = vunpack.c.l.b16 %v664
      %v1237 = vunpack.c.h.b16 %v664
      %v1238 = vunpack.c.l.b16 %v665
      %v1239 = vunpack.c.h.b16 %v665
      %v1240 = vunpack.c.l.b16 %v666
      %v1241 = vunpack.c.h.b16 %v666
      %v1242 = vunpack.c.l.b16 %v667
      %v1243 = vunpack.c.h.b16 %v667
      %v1244 = vunpack.c.l.b16 %v668
      %v1245 = vunpack.c.h.b16 %v668
      %v1246 = vunpack.c.l.b16 %v669
      %v1247 = vunpack.c.h.b16 %v669
      %v1248 = vunpack.c.l.b16 %v670
      %v1249 = vunpack.c.h.b16 %v670
      %v1250 = vunpack.c.l.b16 %v671
      %v1251 = vunpack.c.h.b16 %v671
      %v1252 = vunpack.c.l.b16 %v672
      %v1253 = vunpack.c.h.b16 %v672
      %v1254 = vunpack.c.l.b16 %v673
      %v1255 = vunpack.c.h.b16 %v673
      %v1256 = vunpack.c.l.b16 %v674
      %v1257 = vunpack.c.h.b16 %v674
      %v1258 = vunpack.c.l.b16 %v675
      %v1259 = vunpack.c.h.b16 %v675
      %v1260 = vunpack.c.l.b16 %v676
      %v1261 = vunpack.c.h.b16 %v676
      %v1262 = vunpack.c.l.b16 %v677
      %v1263 = vunpack.c.h.b16 %v677
      %v1264 = vunpack.c.l.b16 %v678
      %v1265 = vunpack.c.h.b16 %v678
      %v1266 = vunpack.c.l.b16 %v679
      %v1267 = vunpack.c.h.b16 %v679
      %v1268 = vunpack.c.l.b16 %v680
      %v1269 = vunpack.c.h.b16 %v680
      %v1270 = vunpack.c.l.b16 %v681
      %v1271 = vunpack.c.h.b16 %v681
      %v1272 = vunpack.c.l.b16 %v682
      %v1273 = vunpack.c.h.b16 %v682
      %v1274 = vunpack.c.l.b16 %v683
      %v1275 = vunpack.c.h.b16 %v683
      %v1276 = vunpack.c.l.b16 %v684
      %v1277 = vunpack.c.h.b16 %v684
      %v1278 = vunpack.c.l.b16 %v685
      %v1279 = vunpack.c.h.b16 %v685
      %v1280 = vunpack.c.l.b16 %v686
      %v1281 = vunpack.c.h.b16 %v686
      %v1282 = vunpack.c.l.b16 %v687
      %v1283 = vunpack.c.h.b16 %v687
      %v1284 = vunpack.c.l.b16 %v688
      %v1285 = vunpack.c.h.b16 %v688
      %v1286 = vunpack.c.l.b16 %v689
      %v1287 = vunpack.c.h.b16 %v689
      %v1288 = vunpack.c.l.b16 %v690
      %v1289 = vunpack.c.h.b16 %v690
      %v1290 = vunpack.c.l.b16 %v691
      %v1291 = vunpack.c.h.b16 %v691
      %v1292 = vunpack.c.l.b16 %v692
      %v1293 = vunpack.c.h.b16 %v692
      %v1294 = vunpack.c.l.b16 %v693
      %v1295 = vunpack.c.h.b16 %v693
      %v1296 = vunpack.c.l.b16 %v694
      %v1297 = vunpack.c.h.b16 %v694
      %v1298 = vunpack.c.l.b16 %v695
      %v1299 = vunpack.c.h.b16 %v695
      %v1300 = vunpack.c.l.b16 %v696
      %v1301 = vunpack.c.h.b16 %v696
      %v1302 = vunpack.c.l.b16 %v697
      %v1303 = vunpack.c.h.b16 %v697
      %v1304 = vunpack.c.l.b16 %v698
      %v1305 = vunpack.c.h.b16 %v698
      %v1306 = vunpack.c.l.b16 %v699
      %v1307 = vunpack.c.h.b16 %v699
      %v1308 = vunpack.c.l.b16 %v700
      %v1309 = vunpack.c.h.b16 %v700
      %v1310 = vunpack.c.l.b16 %v701
      %v1311 = vunpack.c.h.b16 %v701
      %v1312 = vunpack.c.l.b16 %v702
      %v1313 = vunpack.c.h.b16 %v702
      %v1314 = vunpack.c.l.b16 %v703
      %v1315 = vunpack.c.h.b16 %v703
      %v1316 = vunpack.c.l.b16 %v704
      %v1317 = vunpack.c.h.b16 %v704
      %v1318 = vunpack.c.l.b16 %v705
      %v1319 = vunpack.c.h.b16 %v705
      %v1320 = vunpack.c.l.b16 %v706
      %v1321 = vunpack.c.h.b16 %v706
      %v1322 = vunpack.c.l.b16 %v707
      %v1323 = vunpack.c.h.b16 %v707
      %v1324 = vunpack.c.l.b16 %v708
      %v1325 = vunpack.c.h.b16 %v708
      %v1326 = vunpack.c.l.b16 %v709
      %v1327 = vunpack.c.h.b16 %v709
      %v1328 = vunpack.c.l.b16 %v710
      %v1329 = vunpack.c.h.b16 %v710
      %v1330 = vunpack.c.l.b16 %v711
      %v1331 = vunpack.c.h.b16 %v711
      %v1332 = vunpack.c.l.b16 %v712
      %v1333 = vunpack.c.h.b16 %v712
      %v1334 = vunpack.c.l.b16 %v713
      %v1335 = vunpack.c.h.b16 %v713
      %v1336 = vunpack.c.l.b16 %v714
      %v1337 = vunpack.c.h.b16 %v714
      %v1338 = vunpack.c.l.b16 %v715
      %v1339 = vunpack.c.h.b16 %v715
      %v1340 = vunpack.c.l.b16 %v716
      %v1341 = vunpack.c.h.b16 %v716
      %v1342 = vunpack.c.l.b16 %v717
      %v1343 = vunpack.c.h.b16 %v717
      %v1344 = vunpack.c.l.b16 %v718
      %v1345 = vunpack.c.h.b16 %v718
      %v1346 = vunpack.c.l.b16 %v719
      %v1347 = vunpack.c.h.b16 %v719
      %v1348 = vunpack.c.l.b16 %v720
      %v1349 = vunpack.c.h.b16 %v720
      %v1350 = vunpack.c.l.b16 %v721
      %v1351 = vunpack.c.h.b16 %v721
      %v1352 = vunpack.c.l.b16 %v722
      %v1353 = vunpack.c.h.b16 %v722
      %v1354 = vunpack.c.l.b16 %v723
      %v1355 = vunpack.c.h.b16 %v723
      %v1356 = vunpack.c.l.b16 %v724
      %v1357 = vunpack.c.h.b16 %v724
      %v1358 = vunpack.c.l.b16 %v725
      %v1359 = vunpack.c.h.b16 %v725
      %v1360 = vunpack.c.l.b16 %v726
      %v1361 = vunpack.c.h.b16 %v726
      %v1362 = vunpack.c.l.b16 %v727
      %v1363 = vunpack.c.h.b16 %v727
      %v1364 = vunpack.c.l.b16 %v728
      %v1365 = vunpack.c.h.b16 %v728
      %v1366 = vunpack.c.l.b16 %v729
      %v1367 = vunpack.c.h.b16 %v729
      %v1368 = vunpack.c.l.b16 %v730
      %v1369 = vunpack.c.h.b16 %v730
      %v1370 = vunpack.c.l.b16 %v731
      %v1371 = vunpack.c.h.b16 %v731
      %v1372 = vunpack.c.l.b16 %v732
      %v1373 = vunpack.c.h.b16 %v732
      %v1374 = vunpack.c.l.b16 %v733
      %v1375 = vunpack.c.h.b16 %v733
      %v1376 = vunpack.c.l.b16 %v734
      %v1377 = vunpack.c.h.b16 %v734
      %v1378 = vunpack.c.l.b16 %v735
      %v1379 = vunpack.c.h.b16 %v735
      %v1380 = vunpack.c.l.b16 %v736
      %v1381 = vunpack.c.h.b16 %v736
      %v1382 = vunpack.c.l.b16 %v737
      %v1383 = vunpack.c.h.b16 %v737
      %v1384 = vunpack.c.l.b16 %v738
      %v1385 = vunpack.c.h.b16 %v738
      %v1386 = vunpack.c.l.b16 %v739
      %v1387 = vunpack.c.h.b16 %v739
      %v1388 = vunpack.c.l.b16 %v740
      %v1389 = vunpack.c.h.b16 %v740
      %v1390 = vunpack.c.l.b16 %v741
      %v1391 = vunpack.c.h.b16 %v741
      %v1392 = vunpack.c.l.b16 %v742
      %v1393 = vunpack.c.h.b16 %v742
      %v1394 = vunpack.c.l.b16 %v743
      %v1395 = vunpack.c.h.b16 %v743
      %v1396 = vunpack.c.l.b16 %v744
      %v1397 = vunpack.c.h.b16 %v744
      %v1398 = vunpack.c.l.b16 %v745
      %v1399 = vunpack.c.h.b16 %v745
      %v1400 = vunpack.c.l.b16 %v746
      %v1401 = vunpack.c.h.b16 %v746
      %v1402 = vunpack.c.l.b16 %v747
      %v1403 = vunpack.c.h.b16 %v747
      %v1404 = vunpack.c.l.b16 %v748
      %v1405 = vunpack.c.h.b16 %v748
      %v1406 = vunpack.c.l.b16 %v749
      %v1407 = vunpack.c.h.b16 %v749
      %v1408 = vunpack.c.l.b16 %v750
      %v1409 = vunpack.c.h.b16 %v750
      %v1410 = vunpack.c.l.b16 %v751
      %v1411 = vunpack.c.h.b16 %v751
      %v1412 = vunpack.c.l.b16 %v752
      %v1413 = vunpack.c.h.b16 %v752
      %v1414 = vunpack.c.l.b16 %v753
      %v1415 = vunpack.c.h.b16 %v753
      %v1416 = vunpack.c.l.b16 %v754
      %v1417 = vunpack.c.h.b16 %v754
      %v1418 = vunpack.c.l.b16 %v755
      %v1419 = vunpack.c.h.b16 %v755
      %v1420 = vunpack.c.l.b16 %v756
      %v1421 = vunpack.c.h.b16 %v756
      %v1422 = vunpack.c.l.b16 %v757
      %v1423 = vunpack.c.h.b16 %v757
      %v1424 = vunpack.c.l.b16 %v758
      %v1425 = vunpack.c.h.b16 %v758
      %v1426 = vunpack.c.l.b16 %v759
      %v1427 = vunpack.c.h.b16 %v759
      %v1428 = vunpack.c.l.b16 %v760
      %v1429 = vunpack.c.h.b16 %v760
      %v1430 = vunpack.c.l.b16 %v761
      %v1431 = vunpack.c.h.b16 %v761
      %v1432 = vunpack.c.l.b16 %v762
      %v1433 = vunpack.c.h.b16 %v762
      %v1434 = vunpack.c.l.b16 %v763
      %v1435 = vunpack.c.h.b16 %v763
      %v1436 = vunpack.c.l.b16 %v764
      %v1437 = vunpack.c.h.b16 %v764
      %v1438 = vunpack.c.l.b16 %v765
      %v1439 = vunpack.c.h.b16 %v765
      %v1440 = vunpack.c.l.b16 %v766
      %v1441 = vunpack.c.h.b16 %v766
      %v1442 = vunpack.c.l.b16 %v767
      %v1443 = vunpack.c.h.b16 %v767
      %v1444 = vunpack.c.l.b16 %v768
      %v1445 = vunpack.c.h.b16 %v768
      %v1446 = vunpack.c.l.b16 %v769
      %v1447 = vunpack.c.h.b16 %v769
      %v1448 = vunpack.c.l.b16 %v770
      %v1449 = vunpack.c.h.b16 %v770
      %v1450 = vunpack.c.l.b16 %v771
      %v1451 = vunpack.c.h.b16 %v771
      %v1452 = vunpack.c.l.b16 %v772
      %v1453 = vunpack.c.h.b16 %v772
      %v1454 = vunpack.c.l.b16 %v773
      %v1455 = vunpack.c.h.b16 %v773
      %v1456 = vunpack.c.l.b16 %v774
      %v1457 = vunpack.c.h.b16 %v774
      %v1458 = vunpack.c.l.b16 %v775
      %v1459 = vunpack.c.h.b16 %v775
      %v1460 = vunpack.c.l.b16 %v776
      %v1461 = vunpack.c.h.b16 %v776
      %v1462 = vunpack.c.l.b16 %v777
      %v1463 = vunpack.c.h.b16 %v777
      %v1464 = vunpack.c.l.b16 %v778
      %v1465 = vunpack.c.h.b16 %v778
      %v1466 = vunpack.c.l.b16 %v779
      %v1467 = vunpack.c.h.b16 %v779
      %v1468 = vunpack.c.l.b16 %v780
      %v1469 = vunpack.c.h.b16 %v780
      %v1470 = vunpack.c.l.b16 %v781
      %v1471 = vunpack.c.h.b16 %v781
      %v1472 = vunpack.c.l.b16 %v782
      %v1473 = vunpack.c.h.b16 %v782
      %v1474 = vunpack.c.l.b16 %v783
      %v1475 = vunpack.c.h.b16 %v783
      %v1476 = vunpack.c.l.b16 %v784
      %v1477 = vunpack.c.h.b16 %v784
      %v1478 = vunpack.c.l.b16 %v785
      %v1479 = vunpack.c.h.b16 %v785
      %v1480 = vunpack.c.l.b16 %v786
      %v1481 = vunpack.c.h.b16 %v786
      %v1482 = vunpack.c.l.b16 %v787
      %v1483 = vunpack.c.h.b16 %v787
      %v1484 = vunpack.c.l.b16 %v788
      %v1485 = vunpack.c.h.b16 %v788
      %v1486 = vunpack.c.l.b16 %v789
      %v1487 = vunpack.c.h.b16 %v789
      %v1488 = vunpack.c.l.b16 %v790
      %v1489 = vunpack.c.h.b16 %v790
      %v1490 = vunpack.c.l.b16 %v791
      %v1491 = vunpack.c.h.b16 %v791
      %v1492 = vunpack.c.l.b16 %v792
      %v1493 = vunpack.c.h.b16 %v792
      %v1494 = vunpack.c.l.b16 %v793
      %v1495 = vunpack.c.h.b16 %v793
      %v1496 = vunpack.c.l.b16 %v794
      %v1497 = vunpack.c.h.b16 %v794
      %v1498 = vunpack.c.l.b16 %v795
      %v1499 = vunpack.c.h.b16 %v795
      %v1500 = vunpack.c.l.b16 %v796
      %v1501 = vunpack.c.h.b16 %v796
      %v1502 = vunpack.c.l.b16 %v797
      %v1503 = vunpack.c.h.b16 %v797
      %v1504 = vunpack.c.l.b16 %v798
      %v1505 = vunpack.c.h.b16 %v798
      %v1506 = vunpack.c.l.b16 %v799
      %v1507 = vunpack.c.h.b16 %v799
      %v1508 = vunpack.c.l.b16 %v800
      %v1509 = vunpack.c.h.b16 %v800
      %v1510 = vunpack.c.l.b16 %v801
      %v1511 = vunpack.c.h.b16 %v801
      %v1512 = vunpack.c.l.b16 %v802
      %v1513 = vunpack.c.h.b16 %v802
      %v1514 = vunpack.c.l.b16 %v803
      %v1515 = vunpack.c.h.b16 %v803
      %v1516 = vunpack.c.l.b16 %v804
      %v1517 = vunpack.c.h.b16 %v804
      %v1518 = vunpack.c.l.b16 %v805
      %v1519 = vunpack.c.h.b16 %v805
      %v1520 = vunpack.c.l.b16 %v806
      %v1521 = vunpack.c.h.b16 %v806
      %v1522 = vunpack.c.l.b16 %v807
      %v1523 = vunpack.c.h.b16 %v807
      %v1524 = vunpack.c.l.b16 %v808
      %v1525 = vunpack.c.h.b16 %v808
      %v1526 = vunpack.c.l.b16 %v809
      %v1527 = vunpack.c.h.b16 %v809
      %v1528 = vunpack.c.l.b16 %v810
      %v1529 = vunpack.c.h.b16 %v810
      %v1530 = vunpack.c.l.b16 %v811
      %v1531 = vunpack.c.h.b16 %v811
      %v1532 = vunpack.c.l.b16 %v812
      %v1533 = vunpack.c.h.b16 %v812
      %v1534 = vunpack.c.l.b16 %v813
      %v1535 = vunpack.c.h.b16 %v813
      %v1536 = vunpack.c.l.b16 %v814
      %v1537 = vunpack.c.h.b16 %v814
      %v1538 = vunpack.c.l.b16 %v815
      %v1539 = vunpack.c.h.b16 %v815
      %v1540 = vunpack.c.l.b16 %v816
      %v1541 = vunpack.c.h.b16 %v816
      %v1542 = vunpack.c.l.b16 %v817
      %v1543 = vunpack.c.h.b16 %v817
      %v1544 = vunpack.c.l.b16 %v818
      %v1545 = vunpack.c.h.b16 %v818
      %v1546 = vunpack.c.l.b16 %v819
      %v1547 = vunpack.c.h.b16 %v819
      %v1548 = vunpack.c.l.b16 %v820
      %v1549 = vunpack.c.h.b16 %v820
      %v1550 = vunpack.c.l.b16 %v821
      %v1551 = vunpack.c.h.b16 %v821
      %v1552 = vunpack.c.l.b16 %v822
      %v1553 = vunpack.c.h.b16 %v822
      %v1554 = vunpack.c.l.b16 %v823
      %v1555 = vunpack.c.h.b16 %v823
      %v1556 = vunpack.c.l.b16 %v824
      %v1557 = vunpack.c.h.b16 %v824
      %v1558 = vunpack.c.l.b16 %v825
      %v1559 = vunpack.c.h.b16 %v825
      %v1560 = vunpack.c.l.b16 %v826
      %v1561 = vunpack.c.h.b16 %v826
      %v1562 = vunpack.c.l.b16 %v827
      %v1563 = vunpack.c.h.b16 %v827
      %v1564 = vunpack.c.l.b16 %v828
      %v1565 = vunpack.c.h.b16 %v828
      %v1566 = vunpack.c.l.b16 %v829
      %v1567 = vunpack.c.h.b16 %v829
      %v1568 = vunpack.c.l.b16 %v830
      %v1569 = vunpack.c.h.b16 %v830
      %v1570 = vunpack.c.l.b16 %v831
      %v1571 = vunpack.c.h.b16 %v831
      %v1572 = vunpack.c.l.b16 %v832
      %v1573 = vunpack.c.h.b16 %v832
      %v1574 = vunpack.c.l.b16 %v833
      %v1575 = vunpack.c.h.b16 %v833
      %v1576 = vunpack.c.l.b16 %v834
      %v1577 = vunpack.c.h.b16 %v834
      %v1578 = vunpack.c.l.b16 %v835
      %v1579 = vunpack.c.h.b16 %v835
      %v1580 = vunpack.c.l.b16 %v836
      %v1581 = vunpack.c.h.b16 %v836
      %v1582 = vunpack.c.l.b16 %v837
      %v1583 = vunpack.c.h.b16 %v837
      %v1584 = vunpack.c.l.b16 %v838
      %v1585 = vunpack.c.h.b16 %v838
      %v1586 = vunpack.c.l.b16 %v839
      %v1587 = vunpack.c.h.b16 %v839
      %v1588 = vunpack.c.l.b16 %v840
      %v1589 = vunpack.c.h.b16 %v840
      %v1590 = vunpack.c.l.b16 %v841
      %v1591 = vunpack.c.h.b16 %v841
      %v1592 = vunpack.c.l.b16 %v842
      %v1593 = vunpack.c.h.b16 %v842
      %v1594 = vunpack.c.l.b16 %v843
      %v1595 = vunpack.c.h.b16 %v843
      %v1596 = vunpack.c.l.b16 %v844
      %v1597 = vunpack.c.h.b16 %v844
      %v1598 = vunpack.c.l.b16 %v845
      %v1599 = vunpack.c.h.b16 %v845
      %v1600 = vunpack.c.l.b16 %v846
      %v1601 = vunpack.c.h.b16 %v846
      %v1602 = vunpack.c.l.b16 %v847
      %v1603 = vunpack.c.h.b16 %v847
      %v1604 = vunpack.c.l.b16 %v848
      %v1605 = vunpack.c.h.b16 %v848
      %v1606 = vunpack.c.l.b16 %v849
      %v1607 = vunpack.c.h.b16 %v849
      %v1608 = vunpack.c.l.b16 %v850
      %v1609 = vunpack.c.h.b16 %v850
      %v1610 = vunpack.c.l.b16 %v851
      %v1611 = vunpack.c.h.b16 %v851
      %v1612 = vunpack.c.l.b16 %v852
      %v1613 = vunpack.c.h.b16 %v852
      %v1614 = vunpack.c.l.b16 %v853
      %v1615 = vunpack.c.h.b16 %v853
      %v1616 = vunpack.c.l.b16 %v854
      %v1617 = vunpack.c.h.b16 %v854
      %v1618 = vunpack.c.l.b16 %v855
      %v1619 = vunpack.c.h.b16 %v855
      %v1620 = vunpack.c.l.b16 %v856
      %v1621 = vunpack.c.h.b16 %v856
      %v1622 = vunpack.c.l.b16 %v857
      %v1623 = vunpack.c.h.b16 %v857
      %v1624 = vunpack.c.l.b16 %v858
      %v1625 = vunpack.c.h.b16 %v858
      %v1626 = vunpack.c.l.b16 %v859
      %v1627 = vunpack.c.h.b16 %v859
      %v1628 = vunpack.c.l.b16 %v860
      %v1629 = vunpack.c.h.b16 %v860
      %v1630 = vunpack.c.l.b16 %v861
      %v1631 = vunpack.c.h.b16 %v861
      %v1632 = vunpack.c.l.b16 %v862
      %v1633 = vunpack.c.h.b16 %v862
      %v1634 = vunpack.c.l.b16 %v863
      %v1635 = vunpack.c.h.b16 %v863
      %v1636 = vunpack.c.l.b16 %v864
      %v1637 = vunpack.c.h.b16 %v864
      %v1638 = vunpack.c.l.b16 %v865
      %v1639 = vunpack.c.h.b16 %v865
      %v1640 = vunpack.c.l.b16 %v866
      %v1641 = vunpack.c.h.b16 %v866
      %v1642 = vunpack.c.l.b16 %v867
      %v1643 = vunpack.c.h.b16 %v867
      %v1644 = vunpack.c.l.b16 %v868
      %v1645 = vunpack.c.h.b16 %v868
      %v1646 = vunpack.c.l.b16 %v869
      %v1647 = vunpack.c.h.b16 %v869
      %v1648 = vunpack.c.l.b16 %v870
      %v1649 = vunpack.c.h.b16 %v870
      %v1650 = vunpack.c.l.b16 %v871
      %v1651 = vunpack.c.h.b16 %v871
      %v1652 = vunpack.c.l.b16 %v872
      %v1653 = vunpack.c.h.b16 %v872
      %v1654 = vunpack.c.l.b16 %v873
      %v1655 = vunpack.c.h.b16 %v873
      %v1656 = vunpack.c.l.b16 %v874
      %v1657 = vunpack.c.h.b16 %v874
      %v1658 = vunpack.c.l.b16 %v875
      %v1659 = vunpack.c.h.b16 %v875
      %v1660 = vunpack.c.l.b16 %v876
      %v1661 = vunpack.c.h.b16 %v876
      %v1662 = vunpack.c.l.b16 %v877
      %v1663 = vunpack.c.h.b16 %v877
      %v1664 = vunpack.c.l.b16 %v878
      %v1665 = vunpack.c.h.b16 %v878
      %v1666 = vunpack.c.l.b16 %v879
      %v1667 = vunpack.c.h.b16 %v879
      %v1668 = vunpack.c.l.b16 %v880
      %v1669 = vunpack.c.h.b16 %v880
      %v1670 = vunpack.c.l.b16 %v881
      %v1671 = vunpack.c.h.b16 %v881
      %v1672 = vunpack.c.l.b16 %v882
      %v1673 = vunpack.c.h.b16 %v882
      %v1674 = vunpack.c.l.b16 %v883
      %v1675 = vunpack.c.h.b16 %v883
      %v1676 = vunpack.c.l.b16 %v884
      %v1677 = vunpack.c.h.b16 %v884
      %v1678 = vunpack.c.l.b16 %v885
      %v1679 = vunpack.c.h.b16 %v885
      %v1680 = vunpack.c.l.b16 %v886
      %v1681 = vunpack.c.h.b16 %v886
      %v1682 = vunpack.c.l.b16 %v887
      %v1683 = vunpack.c.h.b16 %v887
      %v1684 = vunpack.c.l.b16 %v888
      %v1685 = vunpack.c.h.b16 %v888
      %v1686 = vunpack.c.l.b16 %v889
      %v1687 = vunpack.c.h.b16 %v889
      %v1688 = vunpack.c.l.b16 %v890
      %v1689 = vunpack.c.h.b16 %v890
      %v1690 = vunpack.c.l.b16 %v891
      %v1691 = vunpack.c.h.b16 %v891
      %v1692 = vunpack.c.l.b16 %v892
      %v1693 = vunpack.c.h.b16 %v892
      %v1694 = vunpack.c.l.b16 %v893
      %v1695 = vunpack.c.h.b16 %v893
      %v1696 = vunpack.c.l.b16 %v894
      %v1697 = vunpack.c.h.b16 %v894
      %v1698 = vunpack.c.l.b16 %v895
      %v1699 = vunpack.c.h.b16 %v895
      %v1700 = vunpack.c.l.b16 %v896
      %v1701 = vunpack.c.h.b16 %v896
      %v1702 = vunpack.c.l.b16 %v897
      %v1703 = vunpack.c.h.b16 %v897
      %v1704 = vunpack.c.l.b16 %v898
      %v1705 = vunpack.c.h.b16 %v898
      %v1706 = vunpack.c.l.b16 %v899
      %v1707 = vunpack.c.h.b16 %v899
      %v1708 = vunpack.c.l.b16 %v900
      %v1709 = vunpack.c.h.b16 %v900
      %v1710 = vunpack.c.l.b16 %v901
      %v1711 = vunpack.c.h.b16 %v901
      %v1712 = vpack.c.b16 %v1208, %v1200
      %v1713 = vpack.c.b16 %v1209, %v1201
      %v1714 = vpack.c.b16 %v1210, %v1202
      %v1715 = vpack.c.b16 %v1211, %v1203
      %v1716 = vpack.c.b16 %v1212, %v1204
      %v1717 = vpack.c.b16 %v1213, %v1205
      %v1718 = vpack.c.b16 %v1214, %v1206
      %v1719 = vpack.c.b16 %v1215, %v1207
      %v1720 = vpack.c.b16 %v1224, %v1216
      %v1721 = vpack.c.b16 %v1225, %v1217
      %v1722 = vpack.c.b16 %v1226, %v1218
      %v1723 = vpack.c.b16 %v1227, %v1219
      %v1724 = vpack.c.b16 %v1228, %v1220
      %v1725 = vpack.c.b16 %v1229, %v1221
      %v1726 = vpack.c.b16 %v1230, %v1222
      %v1727 = vpack.c.b16 %v1231, %v1223
      %v1728 = vpack.c.b16 %v1240, %v1232
      %v1729 = vpack.c.b16 %v1241, %v1233
      %v1730 = vpack.c.b16 %v1242, %v1234
      %v1731 = vpack.c.b16 %v1243, %v1235
      %v1732 = vpack.c.b16 %v1244, %v1236
      %v1733 = vpack.c.b16 %v1245, %v1237
      %v1734 = vpack.c.b16 %v1246, %v1238
      %v1735 = vpack.c.b16 %v1247, %v1239
      %v1736 = vpack.c.b16 %v1256, %v1248
      %v1737 = vpack.c.b16 %v1257, %v1249
      %v1738 = vpack.c.b16 %v1258, %v1250
      %v1739 = vpack.c.b16 %v1259, %v1251
      %v1740 = vpack.c.b16 %v1260, %v1252
      %v1741 = vpack.c.b16 %v1261, %v1253
      %v1742 = vpack.c.b16 %v1262, %v1254
      %v1743 = vpack.c.b16 %v1263, %v1255
      %v1744 = vpack.c.b16 %v1272, %v1264
      %v1745 = vpack.c.b16 %v1273, %v1265
      %v1746 = vpack.c.b16 %v1274, %v1266
      %v1747 = vpack.c.b16 %v1275, %v1267
      %v1748 = vpack.c.b16 %v1276, %v1268
      %v1749 = vpack.c.b16 %v1277, %v1269
      %v1750 = vpack.c.b16 %v1278, %v1270
      %v1751 = vpack.c.b16 %v1279, %v1271
      %v1752 = vpack.c.b16 %v1288, %v1280
      %v1753 = vpack.c.b16 %v1289, %v1281
      %v1754 = vpack.c.b16 %v1290, %v1282
      %v1755 = vpack.c.b16 %v1291, %v1283
      %v1756 = vpack.c.b16 %v1292, %v1284
      %v1757 = vpack.c.b16 %v1293, %v1285
      %v1758 = vpack.c.b16 %v1294, %v1286
      %v1759 = vpack.c.b16 %v1295, %v1287
      %v1760 = vpack.c.b16 %v1304, %v1296
      %v1761 = vpack.c.b16 %v1305, %v1297
      %v1762 = vpack.c.b16 %v1306, %v1298
      %v1763 = vpack.c.b16 %v1307, %v1299
      %v1764 = vpack.c.b16 %v1308, %v1300
      %v1765 = vpack.c.b16 %v1309, %v1301
      %v1766 = vpack.c.b16 %v1310, %v1302
      %v1767 = vpack.c.b16 %v1311, %v1303
      %v1768 = vpack.c.b16 %v1320, %v1312
      %v1769 = vpack.c.b16 %v1321, %v1313
      %v1770 = vpack.c.b16 %v1322, %v1314
      %v1771 = vpack.c.b16 %v1323, %v1315
      %v1772 = vpack.c.b16 %v1324, %v1316
      %v1773 = vpack.c.b16 %v1325, %v1317
      %v1774 = vpack.c.b16 %v1326, %v1318
      %v1775 = vpack.c.b16 %v1327, %v1319
      %v1776 = vpack.c.b16 %v1336, %v1328
      %v1777 = vpack.c.b16 %v1337, %v1329
      %v1778 = vpack.c.b16 %v1338, %v1330
      %v1779 = vpack.c.b16 %v1339, %v1331
      %v1780 = vpack.c.b16 %v1340, %v1332
      %v1781 = vpack.c.b16 %v1341, %v1333
      %v1782 = vpack.c.b16 %v1342, %v1334
      %v1783 = vpack.c.b16 %v1343, %v1335
      %v1784 = vpack.c.b16 %v1352, %v1344
      %v1785 = vpack.c.b16 %v1353, %v1345
      %v1786 = vpack.c.b16 %v1354, %v1346
      %v1787 = vpack.c.b16 %v1355, %v1347
      %v1788 = vpack.c.b16 %v1356, %v1348
      %v1789 = vpack.c.b16 %v1357, %v1349
      %v1790 = vpack.c.b16 %v1358, %v1350
      %v1791 = vpack.c.b16 %v1359, %v1351
      %v1792 = vpack.c.b16 %v1368, %v1360
      %v1793 = vpack.c.b16 %v1369, %v1361
      %v1794 = vpack.c.b16 %v1370, %v1362
      %v1795 = vpack.c.b16 %v1371, %v1363
      %v1796 = vpack.c.b16 %v1372, %v1364
      %v1797 = vpack.c.b16 %v1373, %v1365
      %v1798 = vpack.c.b16 %v1374, %v1366
      %v1799 = vpack.c.b16 %v1375, %v1367
      %v1800 = vpack.c.b16 %v1384, %v1376
      %v1801 = vpack.c.b16 %v1385, %v1377
      %v1802 = vpack.c.b16 %v1386, %v1378
      %v1803 = vpack.c.b16 %v1387, %v1379
      %v1804 = vpack.c.b16 %v1388, %v1380
      %v1805 = vpack.c.b16 %v1389, %v1381
      %v1806 = vpack.c.b16 %v1390, %v1382
      %v1807 = vpack.c.b16 %v1391, %v1383
      %v1808 = vpack.c.b16 %v1400, %v1392
      %v1809 = vpack.c.b16 %v1401, %v1393
      %v1810 = vpack.c.b16 %v1402, %v1394
      %v1811 = vpack.c.b16 %v1403, %v1395
      %v1812 = vpack.c.b16 %v1404, %v1396
      %v1813 = vpack.c.b16 %v1405, %v1397
      %v1814 = vpack.c.b16 %v1406, %v1398
      %v1815 = vpack.c.b16 %v1407, %v1399
      %v1816 = vpack.c.b16 %v1416, %v1408
      %v1817 = vpack.c.b16 %v1417, %v1409
      %v1818 = vpack.c.b16 %v1418, %v1410
      %v1819 = vpack.c.b16 %v1419, %v1411
      %v1820 = vpack.c.b16 %v1420, %v1412
      %v1821 = vpack.c.b16 %v1421, %v1413
      %v1822 = vpack.c.b16 %v1422, %v1414
      %v1823 = vpack.c.b16 %v1423, %v1415
      %v1824 = vpack.c.b16 %v1432, %v1424
      %v1825 = vpack.c.b16 %v1433, %v1425
      %v1826 = vpack.c.b16 %v1434, %v1426
      %v1827 = vpack.c.b16 %v1435, %v1427
      %v1828 = vpack.c.b16 %v1436, %v1428
      %v1829 = vpack.c.b16 %v1437, %v1429
      %v1830 = vpack.c.b16 %v1438, %v1430
      %v1831 = vpack.c.b16 %v1439, %v1431
      %v1832 = vpack.c.b16 %v1448, %v1440
      %v1833 = vpack.c.b16 %v1449, %v1441
      %v1834 = vpack.c.b16 %v1450, %v1442
      %v1835 = vpack.c.b16 %v1451, %v1443
      %v1836 = vpack.c.b16 %v1452, %v1444
      %v1837 = vpack.c.b16 %v1453, %v1445
      %v1838 = vpack.c.b16 %v1454, %v1446
      %v1839 = vpack.c.b16 %v1455, %v1447
      %v1840 = vpack.c.b16 %v1464, %v1456
      %v1841 = vpack.c.b16 %v1465, %v1457
      %v1842 = vpack.c.b16 %v1466, %v1458
      %v1843 = vpack.c.b16 %v1467, %v1459
      %v1844 = vpack.c.b16 %v1468, %v1460
      %v1845 = vpack.c.b16 %v1469, %v1461
      %v1846 = vpack.c.b16 %v1470, %v1462
      %v1847 = vpack.c.b16 %v1471, %v1463
      %v1848 = vpack.c.b16 %v1480, %v1472
      %v1849 = vpack.c.b16 %v1481, %v1473
      %v1850 = vpack.c.b16 %v1482, %v1474
      %v1851 = vpack.c.b16 %v1483, %v1475
      %v1852 = vpack.c.b16 %v1484, %v1476
      %v1853 = vpack.c.b16 %v1485, %v1477
      %v1854 = vpack.c.b16 %v1486, %v1478
      %v1855 = vpack.c.b16 %v1487, %v1479
      %v1856 = vpack.c.b16 %v1496, %v1488
      %v1857 = vpack.c.b16 %v1497, %v1489
      %v1858 = vpack.c.b16 %v1498, %v1490
      %v1859 = vpack.c.b16 %v1499, %v1491
      %v1860 = vpack.c.b16 %v1500, %v1492
      %v1861 = vpack.c.b16 %v1501, %v1493
      %v1862 = vpack.c.b16 %v1502, %v1494
      %v1863 = vpack.c.b16 %v1503, %v1495
      %v1864 = vpack.c.b16 %v1512, %v1504
      %v1865 = vpack.c.b16 %v1513, %v1505
      %v1866 = vpack.c.b16 %v1514, %v1506
      %v1867 = vpack.c.b16 %v1515, %v1507
      %v1868 = vpack.c.b16 %v1516, %v1508
      %v1869 = vpack.c.b16 %v1517, %v1509
      %v1870 = vpack.c.b16 %v1518, %v1510
      %v1871 = vpack.c.b16 %v1519, %v1511
      %v1872 = vpack.c.b16 %v1528, %v1520
      %v1873 = vpack.c.b16 %v1529, %v1521
      %v1874 = vpack.c.b16 %v1530, %v1522
      %v1875 = vpack.c.b16 %v1531, %v1523
      %v1876 = vpack.c.b16 %v1532, %v1524
      %v1877 = vpack.c.b16 %v1533, %v1525
      %v1878 = vpack.c.b16 %v1534, %v1526
      %v1879 = vpack.c.b16 %v1535, %v1527
      %v1880 = vpack.c.b16 %v1544, %v1536
      %v1881 = vpack.c.b16 %v1545, %v1537
      %v1882 = vpack.c.b16 %v1546, %v1538
      %v1883 = vpack.c.b16 %v1547, %v1539
      %v1884 = vpack.c.b16 %v1548, %v1540
      %v1885 = vpack.c.b16 %v1549, %v1541
      %v1886 = vpack.c.b16 %v1550, %v1542
      %v1887 = vpack.c.b16 %v1551, %v1543
      %v1888 = vpack.c.b16 %v1560, %v1552
      %v1889 = vpack.c.b16 %v1561, %v1553
      %v1890 = vpack.c.b16 %v1562, %v1554
      %v1891 = vpack.c.b16 %v1563, %v1555
      %v1892 = vpack.c.b16 %v1564, %v1556
      %v1893 = vpack.c.b16 %v1565, %v1557
      %v1894 = vpack.c.b16 %v1566, %v1558
      %v1895 = vpack.c.b16 %v1567, %v1559
      %v1896 = vpack.c.b16 %v1576, %v1568
      %v1897 = vpack.c.b16 %v1577, %v1569
      %v1898 = vpack.c.b16 %v1578, %v1570
      %v1899 = vpack.c.b16 %v1579, %v1571
      %v1900 = vpack.c.b16 %v1580, %v1572
      %v1901 = vpack.c.b16 %v1581, %v1573
      %v1902 = vpack.c.b16 %v1582, %v1574
      %v1903 = vpack.c.b16 %v1583, %v1575
      %v1904 = vpack.c.b16 %v1592, %v1584
      %v1905 = vpack.c.b16 %v1593, %v1585
      %v1906 = vpack.c.b16 %v1594, %v1586
      %v1907 = vpack.c.b16 %v1595, %v1587
      %v1908 = vpack.c.b16 %v1596, %v1588
      %v1909 = vpack.c.b16 %v1597, %v1589
      %v1910 = vpack.c.b16 %v1598, %v1590
      %v1911 = vpack.c.b16 %v1599, %v1591
      %v1912 = vpack.c.b16 %v1608, %v1600
      %v1913 = vpack.c.b16 %v1609, %v1601
      %v1914 = vpack.c.b16 %v1610, %v1602
      %v1915 = vpack.c.b16 %v1611, %v1603
      %v1916 = vpack.c.b16 %v1612, %v1604
      %v1917 = vpack.c.b16 %v1613, %v1605
      %v1918 = vpack.c.b16 %v1614, %v1606
      %v1919 = vpack.c.b16 %v1615, %v1607
      %v1920 = vpack.c.b16 %v1624, %v1616
      %v1921 = vpack.c.b16 %v1625, %v1617
      %v1922 = vpack.c.b16 %v1626, %v1618
      %v1923 = vpack.c.b16 %v1627, %v1619
      %v1924 = vpack.c.b16 %v1628, %v1620
      %v1925 = vpack.c.b16 %v1629, %v1621
      %v1926 = vpack.c.b16 %v1630, %v1622
      %v1927 = vpack.c.b16 %v1631, %v1623
      %v1928 = vpack.c.b16 %v1640, %v1632
      %v1929 = vpack.c.b16 %v1641, %v1633
      %v1930 = vpack.c.b16 %v1642, %v1634
      %v1931 = vpack.c.b16 %v1643, %v1635
      %v1932 = vpack.c.b16 %v1644, %v1636
      %v1933 = vpack.c.b16 %v1645, %v1637
      %v1934 = vpack.c.b16 %v1646, %v1638
      %v1935 = vpack.c.b16 %v1647, %v1639
      %v1936 = vpack.c.b16 %v1656, %v1648
      %v1937 = vpack.c.b16 %v1657, %v1649
      %v1938 = vpack.c.b16 %v1658, %v1650
      %v1939 = vpack.c.b16 %v1659, %v1651
      %v1940 = vpack.c.b16 %v1660, %v1652
      %v1941 = vpack.c.b16 %v1661, %v1653
      %v1942 = vpack.c.b16 %v1662, %v1654
      %v1943 = vpack.c.b16 %v1663, %v1655
      %v1944 = vpack.c.b16 %v1672, %v1664
      %v1945 = vpack.c.b16 %v1673, %v1665
      %v1946 = vpack.c.b16 %v1674, %v1666
      %v1947 = vpack.c.b16 %v1675, %v1667
      %v1948 = vpack.c.b16 %v1676, %v1668
      %v1949 = vpack.c.b16 %v1677, %v1669
      %v1950 = vpack.c.b16 %v1678, %v1670
      %v1951 = vpack.c.b16 %v1679, %v1671
      %v1952 = vpack.c.b16 %v1688, %v1680
      %v1953 = vpack.c.b16 %v1689, %v1681
      %v1954 = vpack.c.b16 %v1690, %v1682
      %v1955 = vpack.c.b16 %v1691, %v1683
      %v1956 = vpack.c.b16 %v1692, %v1684
      %v1957 = vpack.c.b16 %v1693, %v1685
      %v1958 = vpack.c.b16 %v1694, %v1686
      %v1959 = vpack.c.b16 %v1695, %v1687
      %v1960 = vpack.c.b16 %v1704, %v1696
      %v1961 = vpack.c.b16 %v1705, %v1697
      %v1962 = vpack.c.b16 %v1706, %v1698
      %v1963 = vpack.c.b16 %v1707, %v1699
      %v1964 = vpack.c.b16 %v1708, %v1700
      %v1965 = vpack.c.b16 %v1709, %v1701
      %v1966 = vpack.c.b16 %v1710, %v1702
      %v1967 = vpack.c.b16 %v1711, %v1703
      %2224 = vmatprep.subr.bf16.mxu0 %v1713
      %2225 = vmatpush1.bf16.msra.mxu0 %v1712
      %2226 = vmatprep.subr.bf16.mxu0 %v1721
      %2227 = vmatpush1.bf16.msra.mxu0 %v1720
      %2228 = vmatprep.subr.bf16.mxu0 %v1729
      %2229 = vmatpush1.bf16.msra.mxu0 %v1728
      %2230 = vmatprep.subr.bf16.mxu0 %v1737
      %2231 = vmatpush1.bf16.msra.mxu0 %v1736
      %2232 = vmatprep.subr.bf16.mxu0 %v1745
      %2233 = vmatpush1.bf16.msra.mxu0 %v1744
      %2234 = vmatprep.subr.bf16.mxu0 %v1753
      %2235 = vmatpush1.bf16.msra.mxu0 %v1752
      %2236 = vmatprep.subr.bf16.mxu0 %v1761
      %2237 = vmatpush1.bf16.msra.mxu0 %v1760
      %2238 = vmatprep.subr.bf16.mxu0 %v1769
      %2239 = vmatpush1.bf16.msra.mxu0 %v1768
      %2240 = vmatprep.subr.bf16.mxu0 %v1777
      %2241 = vmatpush1.bf16.msra.mxu0 %v1776
      %2242 = vmatprep.subr.bf16.mxu0 %v1785
      %2243 = vmatpush1.bf16.msra.mxu0 %v1784
      %2244 = vmatprep.subr.bf16.mxu0 %v1793
      %2245 = vmatpush1.bf16.msra.mxu0 %v1792
      %2246 = vmatprep.subr.bf16.mxu0 %v1801
      %2247 = vmatpush1.bf16.msra.mxu0 %v1800
      %2248 = vmatprep.subr.bf16.mxu0 %v1809
      %2249 = vmatpush1.bf16.msra.mxu0 %v1808
      %2250 = vmatprep.subr.bf16.mxu0 %v1817
      %2251 = vmatpush1.bf16.msra.mxu0 %v1816
      %2252 = vmatprep.subr.bf16.mxu0 %v1825
      %2253 = vmatpush1.bf16.msra.mxu0 %v1824
      %2254 = vmatprep.subr.bf16.mxu0 %v1833
      %2255 = vmatpush1.bf16.msra.mxu0 %v1832
      %2256 = vmatprep.mubr.bf16.mxu0 %v643
      %2257 = vmatmul.mubr.bf16.gmra.mrb[0].mxu0 %v642
      %v2258 = vpop.f32.mrb[0].mxu0
      %v2259 = vadd.f32 %v907, %v2258
      %v2260 = vpop.f32.mrb[0].mxu0
      %v2261 = vadd.f32 %v911, %v2260
      %v2262 = vpop.f32.mrb[0].mxu0
      %v2263 = vpop.f32.mrb[0].mxu0
      %2264 = vdwg.mxu0
      %2265 = vmatprep.subr.bf16.mxu0 %v1841
      %2266 = vmatpush1.bf16.msra.mxu0 %v1840
      %2267 = vmatprep.subr.bf16.mxu0 %v1849
      %2268 = vmatpush1.bf16.msra.mxu0 %v1848
      %2269 = vmatprep.subr.bf16.mxu0 %v1857
      %2270 = vmatpush1.bf16.msra.mxu0 %v1856
      %2271 = vmatprep.subr.bf16.mxu0 %v1865
      %2272 = vmatpush1.bf16.msra.mxu0 %v1864
      %2273 = vmatprep.subr.bf16.mxu0 %v1873
      %2274 = vmatpush1.bf16.msra.mxu0 %v1872
      %2275 = vmatprep.subr.bf16.mxu0 %v1881
      %2276 = vmatpush1.bf16.msra.mxu0 %v1880
      %2277 = vmatprep.subr.bf16.mxu0 %v1889
      %2278 = vmatpush1.bf16.msra.mxu0 %v1888
      %2279 = vmatprep.subr.bf16.mxu0 %v1897
      %2280 = vmatpush1.bf16.msra.mxu0 %v1896
      %2281 = vmatprep.subr.bf16.mxu0 %v1905
      %2282 = vmatpush1.bf16.msra.mxu0 %v1904
      %2283 = vmatprep.subr.bf16.mxu0 %v1913
      %2284 = vmatpush1.bf16.msra.mxu0 %v1912
      %2285 = vmatprep.subr.bf16.mxu0 %v1921
      %2286 = vmatpush1.bf16.msra.mxu0 %v1920
      %2287 = vmatprep.subr.bf16.mxu0 %v1929
      %2288 = vmatpush1.bf16.msra.mxu0 %v1928
      %2289 = vmatprep.subr.bf16.mxu0 %v1937
      %2290 = vmatpush1.bf16.msra.mxu0 %v1936
      %2291 = vmatprep.subr.bf16.mxu0 %v1945
      %2292 = vmatpush1.bf16.msra.mxu0 %v1944
      %2293 = vmatprep.subr.bf16.mxu0 %v1953
      %2294 = vmatpush1.bf16.msra.mxu0 %v1952
      %2295 = vmatprep.subr.bf16.mxu0 %v1961
      %2296 = vmatpush1.bf16.msra.mxu0 %v1960
      %2297 = vmatprep.mubr.bf16.mxu0 %v645
      %2298 = vmatmul.mubr.bf16.gmra.mrb[0].mxu0 %v644
      %v2299 = vpop.f32.mrb[0].mxu0
      %v2300 = vadd.f32 %v2259, %v2299
      %v2301 = vpop.f32.mrb[0].mxu0
      %v2302 = vadd.f32 %v2261, %v2301
      %v2303 = vpop.f32.mrb[0].mxu0
      %v2304 = vpop.f32.mrb[0].mxu0
      %2305 = vdwg.mxu0
      %2306 = vmatprep.subr.bf16.mxu0 %v1715
      %2307 = vmatpush1.bf16.msra.mxu0 %v1714
      %2308 = vmatprep.subr.bf16.mxu0 %v1723
      %2309 = vmatpush1.bf16.msra.mxu0 %v1722
      %2310 = vmatprep.subr.bf16.mxu0 %v1731
      %2311 = vmatpush1.bf16.msra.mxu0 %v1730
      %2312 = vmatprep.subr.bf16.mxu0 %v1739
      %2313 = vmatpush1.bf16.msra.mxu0 %v1738
      %2314 = vmatprep.subr.bf16.mxu0 %v1747
      %2315 = vmatpush1.bf16.msra.mxu0 %v1746
      %2316 = vmatprep.subr.bf16.mxu0 %v1755
      %2317 = vmatpush1.bf16.msra.mxu0 %v1754
      %2318 = vmatprep.subr.bf16.mxu0 %v1763
      %2319 = vmatpush1.bf16.msra.mxu0 %v1762
      %2320 = vmatprep.subr.bf16.mxu0 %v1771
      %2321 = vmatpush1.bf16.msra.mxu0 %v1770
      %2322 = vmatprep.subr.bf16.mxu0 %v1779
      %2323 = vmatpush1.bf16.msra.mxu0 %v1778
      %2324 = vmatprep.subr.bf16.mxu0 %v1787
      %2325 = vmatpush1.bf16.msra.mxu0 %v1786
      %2326 = vmatprep.subr.bf16.mxu0 %v1795
      %2327 = vmatpush1.bf16.msra.mxu0 %v1794
      %2328 = vmatprep.subr.bf16.mxu0 %v1803
      %2329 = vmatpush1.bf16.msra.mxu0 %v1802
      %2330 = vmatprep.subr.bf16.mxu0 %v1811
      %2331 = vmatpush1.bf16.msra.mxu0 %v1810
      %2332 = vmatprep.subr.bf16.mxu0 %v1819
      %2333 = vmatpush1.bf16.msra.mxu0 %v1818
      %2334 = vmatprep.subr.bf16.mxu0 %v1827
      %2335 = vmatpush1.bf16.msra.mxu0 %v1826
      %2336 = vmatprep.subr.bf16.mxu0 %v1835
      %2337 = vmatpush1.bf16.msra.mxu0 %v1834
      %2338 = vmatprep.mubr.bf16.mxu0 %v643
      %2339 = vmatmul.mubr.bf16.gmra.mrb[0].mxu0 %v642
      %v2340 = vpop.f32.mrb[0].mxu0
      %v2341 = vadd.f32 %v915, %v2340
      %v2342 = vpop.f32.mrb[0].mxu0
      %v2343 = vadd.f32 %v919, %v2342
      %v2344 = vpop.f32.mrb[0].mxu0
      %v2345 = vpop.f32.mrb[0].mxu0
      %2346 = vdwg.mxu0
      %2347 = vmatprep.subr.bf16.mxu0 %v1843
      %2348 = vmatpush1.bf16.msra.mxu0 %v1842
      %2349 = vmatprep.subr.bf16.mxu0 %v1851
      %2350 = vmatpush1.bf16.msra.mxu0 %v1850
      %2351 = vmatprep.subr.bf16.mxu0 %v1859
      %2352 = vmatpush1.bf16.msra.mxu0 %v1858
      %2353 = vmatprep.subr.bf16.mxu0 %v1867
      %2354 = vmatpush1.bf16.msra.mxu0 %v1866
      %2355 = vmatprep.subr.bf16.mxu0 %v1875
      %2356 = vmatpush1.bf16.msra.mxu0 %v1874
      %2357 = vmatprep.subr.bf16.mxu0 %v1883
      %2358 = vmatpush1.bf16.msra.mxu0 %v1882
      %2359 = vmatprep.subr.bf16.mxu0 %v1891
      %2360 = vmatpush1.bf16.msra.mxu0 %v1890
      %2361 = vmatprep.subr.bf16.mxu0 %v1899
      %2362 = vmatpush1.bf16.msra.mxu0 %v1898
      %2363 = vmatprep.subr.bf16.mxu0 %v1907
      %2364 = vmatpush1.bf16.msra.mxu0 %v1906
      %2365 = vmatprep.subr.bf16.mxu0 %v1915
      %2366 = vmatpush1.bf16.msra.mxu0 %v1914
      %2367 = vmatprep.subr.bf16.mxu0 %v1923
      %2368 = vmatpush1.bf16.msra.mxu0 %v1922
      %2369 = vmatprep.subr.bf16.mxu0 %v1931
      %2370 = vmatpush1.bf16.msra.mxu0 %v1930
      %2371 = vmatprep.subr.bf16.mxu0 %v1939
      %2372 = vmatpush1.bf16.msra.mxu0 %v1938
      %2373 = vmatprep.subr.bf16.mxu0 %v1947
      %2374 = vmatpush1.bf16.msra.mxu0 %v1946
      %2375 = vmatprep.subr.bf16.mxu0 %v1955
      %2376 = vmatpush1.bf16.msra.mxu0 %v1954
      %2377 = vmatprep.subr.bf16.mxu0 %v1963
      %2378 = vmatpush1.bf16.msra.mxu0 %v1962
      %2379 = vmatprep.mubr.bf16.mxu0 %v645
      %2380 = vmatmul.mubr.bf16.gmra.mrb[0].mxu0 %v644
      %v2381 = vpop.f32.mrb[0].mxu0
      %v2382 = vadd.f32 %v2341, %v2381
      %v2383 = vpop.f32.mrb[0].mxu0
      %v2384 = vadd.f32 %v2343, %v2383
      %v2385 = vpop.f32.mrb[0].mxu0
      %v2386 = vpop.f32.mrb[0].mxu0
      %2387 = vdwg.mxu0
      %2388 = vmatprep.subr.bf16.mxu0 %v1717
      %2389 = vmatpush1.bf16.msra.mxu0 %v1716
      %2390 = vmatprep.subr.bf16.mxu0 %v1725
      %2391 = vmatpush1.bf16.msra.mxu0 %v1724
      %2392 = vmatprep.subr.bf16.mxu0 %v1733
      %2393 = vmatpush1.bf16.msra.mxu0 %v1732
      %2394 = vmatprep.subr.bf16.mxu0 %v1741
      %2395 = vmatpush1.bf16.msra.mxu0 %v1740
      %2396 = vmatprep.subr.bf16.mxu0 %v1749
      %2397 = vmatpush1.bf16.msra.mxu0 %v1748
      %2398 = vmatprep.subr.bf16.mxu0 %v1757
      %2399 = vmatpush1.bf16.msra.mxu0 %v1756
      %2400 = vmatprep.subr.bf16.mxu0 %v1765
      %2401 = vmatpush1.bf16.msra.mxu0 %v1764
      %2402 = vmatprep.subr.bf16.mxu0 %v1773
      %2403 = vmatpush1.bf16.msra.mxu0 %v1772
      %2404 = vmatprep.subr.bf16.mxu0 %v1781
      %2405 = vmatpush1.bf16.msra.mxu0 %v1780
      %2406 = vmatprep.subr.bf16.mxu0 %v1789
      %2407 = vmatpush1.bf16.msra.mxu0 %v1788
      %2408 = vmatprep.subr.bf16.mxu0 %v1797
      %2409 = vmatpush1.bf16.msra.mxu0 %v1796
      %2410 = vmatprep.subr.bf16.mxu0 %v1805
      %2411 = vmatpush1.bf16.msra.mxu0 %v1804
      %2412 = vmatprep.subr.bf16.mxu0 %v1813
      %2413 = vmatpush1.bf16.msra.mxu0 %v1812
      %2414 = vmatprep.subr.bf16.mxu0 %v1821
      %2415 = vmatpush1.bf16.msra.mxu0 %v1820
      %2416 = vmatprep.subr.bf16.mxu0 %v1829
      %2417 = vmatpush1.bf16.msra.mxu0 %v1828
      %2418 = vmatprep.subr.bf16.mxu0 %v1837
      %2419 = vmatpush1.bf16.msra.mxu0 %v1836
      %2420 = vmatprep.mubr.bf16.mxu0 %v643
      %2421 = vmatmul.mubr.bf16.gmra.mrb[0].mxu0 %v642
      %v2422 = vpop.f32.mrb[0].mxu0
      %v2423 = vadd.f32 %v923, %v2422
      %v2424 = vpop.f32.mrb[0].mxu0
      %v2425 = vadd.f32 %v927, %v2424
      %v2426 = vpop.f32.mrb[0].mxu0
      %v2427 = vpop.f32.mrb[0].mxu0
      %2428 = vdwg.mxu0
      %2429 = vmatprep.subr.bf16.mxu0 %v1845
      %2430 = vmatpush1.bf16.msra.mxu0 %v1844
      %2431 = vmatprep.subr.bf16.mxu0 %v1853
      %2432 = vmatpush1.bf16.msra.mxu0 %v1852
      %2433 = vmatprep.subr.bf16.mxu0 %v1861
      %2434 = vmatpush1.bf16.msra.mxu0 %v1860
      %2435 = vmatprep.subr.bf16.mxu0 %v1869
      %2436 = vmatpush1.bf16.msra.mxu0 %v1868
      %2437 = vmatprep.subr.bf16.mxu0 %v1877
      %2438 = vmatpush1.bf16.msra.mxu0 %v1876
      %2439 = vmatprep.subr.bf16.mxu0 %v1885
      %2440 = vmatpush1.bf16.msra.mxu0 %v1884
      %2441 = vmatprep.subr.bf16.mxu0 %v1893
      %2442 = vmatpush1.bf16.msra.mxu0 %v1892
      %2443 = vmatprep.subr.bf16.mxu0 %v1901
      %2444 = vmatpush1.bf16.msra.mxu0 %v1900
      %2445 = vmatprep.subr.bf16.mxu0 %v1909
      %2446 = vmatpush1.bf16.msra.mxu0 %v1908
      %2447 = vmatprep.subr.bf16.mxu0 %v1917
      %2448 = vmatpush1.bf16.msra.mxu0 %v1916
      %2449 = vmatprep.subr.bf16.mxu0 %v1925
      %2450 = vmatpush1.bf16.msra.mxu0 %v1924
      %2451 = vmatprep.subr.bf16.mxu0 %v1933
      %2452 = vmatpush1.bf16.msra.mxu0 %v1932
      %2453 = vmatprep.subr.bf16.mxu0 %v1941
      %2454 = vmatpush1.bf16.msra.mxu0 %v1940
      %2455 = vmatprep.subr.bf16.mxu0 %v1949
      %2456 = vmatpush1.bf16.msra.mxu0 %v1948
      %2457 = vmatprep.subr.bf16.mxu0 %v1957
      %2458 = vmatpush1.bf16.msra.mxu0 %v1956
      %2459 = vmatprep.subr.bf16.mxu0 %v1965
      %2460 = vmatpush1.bf16.msra.mxu0 %v1964
      %2461 = vmatprep.mubr.bf16.mxu0 %v645
      %2462 = vmatmul.mubr.bf16.gmra.mrb[0].mxu0 %v644
      %v2463 = vpop.f32.mrb[0].mxu0
      %v2464 = vadd.f32 %v2423, %v2463
      %v2465 = vpop.f32.mrb[0].mxu0
      %v2466 = vadd.f32 %v2425, %v2465
      %v2467 = vpop.f32.mrb[0].mxu0
      %v2468 = vpop.f32.mrb[0].mxu0
      %2469 = vdwg.mxu0
      %2470 = vmatprep.subr.bf16.mxu0 %v1719
      %2471 = vmatpush1.bf16.msra.mxu0 %v1718
      %2472 = vmatprep.subr.bf16.mxu0 %v1727
      %2473 = vmatpush1.bf16.msra.mxu0 %v1726
      %2474 = vmatprep.subr.bf16.mxu0 %v1735
      %2475 = vmatpush1.bf16.msra.mxu0 %v1734
      %2476 = vmatprep.subr.bf16.mxu0 %v1743
      %2477 = vmatpush1.bf16.msra.mxu0 %v1742
      %2478 = vmatprep.subr.bf16.mxu0 %v1751
      %2479 = vmatpush1.bf16.msra.mxu0 %v1750
      %2480 = vmatprep.subr.bf16.mxu0 %v1759
      %2481 = vmatpush1.bf16.msra.mxu0 %v1758
      %2482 = vmatprep.subr.bf16.mxu0 %v1767
      %2483 = vmatpush1.bf16.msra.mxu0 %v1766
      %2484 = vmatprep.subr.bf16.mxu0 %v1775
      %2485 = vmatpush1.bf16.msra.mxu0 %v1774
      %2486 = vmatprep.subr.bf16.mxu0 %v1783
      %2487 = vmatpush1.bf16.msra.mxu0 %v1782
      %2488 = vmatprep.subr.bf16.mxu0 %v1791
      %2489 = vmatpush1.bf16.msra.mxu0 %v1790
      %2490 = vmatprep.subr.bf16.mxu0 %v1799
      %2491 = vmatpush1.bf16.msra.mxu0 %v1798
      %2492 = vmatprep.subr.bf16.mxu0 %v1807
      %2493 = vmatpush1.bf16.msra.mxu0 %v1806
      %2494 = vmatprep.subr.bf16.mxu0 %v1815
      %2495 = vmatpush1.bf16.msra.mxu0 %v1814
      %2496 = vmatprep.subr.bf16.mxu0 %v1823
      %2497 = vmatpush1.bf16.msra.mxu0 %v1822
      %2498 = vmatprep.subr.bf16.mxu0 %v1831
      %2499 = vmatpush1.bf16.msra.mxu0 %v1830
      %2500 = vmatprep.subr.bf16.mxu0 %v1839
      %2501 = vmatpush1.bf16.msra.mxu0 %v1838
      %2502 = vmatprep.mubr.bf16.mxu0 %v643
      %2503 = vmatmul.mubr.bf16.gmra.mrb[0].mxu0 %v642
      %v2504 = vpop.f32.mrb[0].mxu0
      %v2505 = vadd.f32 %v931, %v2504
      %v2506 = vpop.f32.mrb[0].mxu0
      %v2507 = vadd.f32 %v935, %v2506
      %v2508 = vpop.f32.mrb[0].mxu0
      %v2509 = vpop.f32.mrb[0].mxu0
      %2510 = vdwg.mxu0
      %2511 = vmatprep.subr.bf16.mxu0 %v1847
      %2512 = vmatpush1.bf16.msra.mxu0 %v1846
      %2513 = vmatprep.subr.bf16.mxu0 %v1855
      %2514 = vmatpush1.bf16.msra.mxu0 %v1854
      %2515 = vmatprep.subr.bf16.mxu0 %v1863
      %2516 = vmatpush1.bf16.msra.mxu0 %v1862
      %2517 = vmatprep.subr.bf16.mxu0 %v1871
      %2518 = vmatpush1.bf16.msra.mxu0 %v1870
      %2519 = vmatprep.subr.bf16.mxu0 %v1879
      %2520 = vmatpush1.bf16.msra.mxu0 %v1878
      %2521 = vmatprep.subr.bf16.mxu0 %v1887
      %2522 = vmatpush1.bf16.msra.mxu0 %v1886
      %2523 = vmatprep.subr.bf16.mxu0 %v1895
      %2524 = vmatpush1.bf16.msra.mxu0 %v1894
      %2525 = vmatprep.subr.bf16.mxu0 %v1903
      %2526 = vmatpush1.bf16.msra.mxu0 %v1902
      %2527 = vmatprep.subr.bf16.mxu0 %v1911
      %2528 = vmatpush1.bf16.msra.mxu0 %v1910
      %2529 = vmatprep.subr.bf16.mxu0 %v1919
      %2530 = vmatpush1.bf16.msra.mxu0 %v1918
      %2531 = vmatprep.subr.bf16.mxu0 %v1927
      %2532 = vmatpush1.bf16.msra.mxu0 %v1926
      %2533 = vmatprep.subr.bf16.mxu0 %v1935
      %2534 = vmatpush1.bf16.msra.mxu0 %v1934
      %2535 = vmatprep.subr.bf16.mxu0 %v1943
      %2536 = vmatpush1.bf16.msra.mxu0 %v1942
      %2537 = vmatprep.subr.bf16.mxu0 %v1951
      %2538 = vmatpush1.bf16.msra.mxu0 %v1950
      %2539 = vmatprep.subr.bf16.mxu0 %v1959
      %2540 = vmatpush1.bf16.msra.mxu0 %v1958
      %2541 = vmatprep.subr.bf16.mxu0 %v1967
      %2542 = vmatpush1.bf16.msra.mxu0 %v1966
      %2543 = vmatprep.mubr.bf16.mxu0 %v645
      %2544 = vmatmul.mubr.bf16.gmra.mrb[0].mxu0 %v644
      %v2545 = vpop.f32.mrb[0].mxu0
      %v2546 = vadd.f32 %v2505, %v2545
      %v2547 = vpop.f32.mrb[0].mxu0
      %v2548 = vadd.f32 %v2507, %v2547
      %v2549 = vpop.f32.mrb[0].mxu0
      %v2550 = vpop.f32.mrb[0].mxu0
      %2551 = vdwg.mxu0
      %v2552 = vmax.f32 %v2300, 0.0
      %v2553 = vmax.f32 %v2302, 0.0
      %v2554 = vmax.f32 %v2382, 0.0
      %v2555 = vmax.f32 %v2384, 0.0
      %v2556 = vmax.f32 %v2464, 0.0
      %v2557 = vmax.f32 %v2466, 0.0
      %v2558 = vmax.f32 %v2546, 0.0
      %v2559 = vmax.f32 %v2548, 0.0
      %v2560 = vpack.c.bf16 %v2552, %v2552
      %v2561 = vpack.c.bf16 %v2553, %v2553
      %v2562 = vpack.c.bf16 %v2554, %v2554
      %v2563 = vpack.c.bf16 %v2555, %v2555
      %v2564 = vpack.c.bf16 %v2556, %v2556
      %v2565 = vpack.c.bf16 %v2557, %v2557
      %v2566 = vpack.c.bf16 %v2558, %v2558
      %v2567 = vpack.c.bf16 %v2559, %v2559
      %v2568 = vld [vmem:[#allocation12] sm:$0xf]
      %v2569 = vld [vmem:[#allocation12 + $0x4] sm:$0xf]
      %v2570 = vld [vmem:[#allocation12 + $0x8] sm:$0xf]
      %v2571 = vld [vmem:[#allocation12 + $0xc] sm:$0xf]
      %v2572 = vld [vmem:[#allocation12 + $0x10] sm:$0xf]
      %v2573 = vld [vmem:[#allocation12 + $0x14] sm:$0xf]
      %v2574 = vld [vmem:[#allocation12 + $0x18] sm:$0xf]
      %v2575 = vld [vmem:[#allocation12 + $0x1c] sm:$0xf]
      %v2576 = vld [vmem:[#allocation12 + $0x20] sm:$0xf]
      %v2577 = vld [vmem:[#allocation12 + $0x24] sm:$0xf]
      %v2578 = vld [vmem:[#allocation12 + $0x28] sm:$0xf]
      %v2579 = vld [vmem:[#allocation12 + $0x2c] sm:$0xf]
      %v2580 = vld [vmem:[#allocation12 + $0x30] sm:$0xf]
      %v2581 = vld [vmem:[#allocation12 + $0x34] sm:$0xf]
      %v2582 = vld [vmem:[#allocation12 + $0x38] sm:$0xf]
      %v2583 = vld [vmem:[#allocation12 + $0x3c] sm:$0xf]
      %v2584 = vld [vmem:[#allocation12 + $0x40] sm:$0xf]
      %v2585 = vld [vmem:[#allocation12 + $0x44] sm:$0xf]
      %v2586 = vld [vmem:[#allocation12 + $0x48] sm:$0xf]
      %v2587 = vld [vmem:[#allocation12 + $0x4c] sm:$0xf]
      %v2588 = vld [vmem:[#allocation12 + $0x50] sm:$0xf]
      %v2589 = vld [vmem:[#allocation12 + $0x54] sm:$0xf]
      %v2590 = vld [vmem:[#allocation12 + $0x58] sm:$0xf]
      %v2591 = vld [vmem:[#allocation12 + $0x5c] sm:$0xf]
      %v2592 = vld [vmem:[#allocation12 + $0x60] sm:$0xf]
      %v2593 = vld [vmem:[#allocation12 + $0x64] sm:$0xf]
      %v2594 = vld [vmem:[#allocation12 + $0x68] sm:$0xf]
      %v2595 = vld [vmem:[#allocation12 + $0x6c] sm:$0xf]
      %v2596 = vld [vmem:[#allocation12 + $0x70] sm:$0xf]
      %v2597 = vld [vmem:[#allocation12 + $0x74] sm:$0xf]
      %v2598 = vld [vmem:[#allocation12 + $0x78] sm:$0xf]
      %v2599 = vld [vmem:[#allocation12 + $0x7c] sm:$0xf]
      %v2600 = vld [vmem:[#allocation12 + $0x80] sm:$0xf]
      %v2601 = vld [vmem:[#allocation12 + $0x84] sm:$0xf]
      %v2602 = vld [vmem:[#allocation12 + $0x88] sm:$0xf]
      %v2603 = vld [vmem:[#allocation12 + $0x8c] sm:$0xf]
      %v2604 = vld [vmem:[#allocation12 + $0x90] sm:$0xf]
      %v2605 = vld [vmem:[#allocation12 + $0x94] sm:$0xf]
      %v2606 = vld [vmem:[#allocation12 + $0x98] sm:$0xf]
      %v2607 = vld [vmem:[#allocation12 + $0x9c] sm:$0xf]
      %v2608 = vld [vmem:[#allocation12 + $0xa0] sm:$0xf]
      %v2609 = vld [vmem:[#allocation12 + $0xa4] sm:$0xf]
      %v2610 = vld [vmem:[#allocation12 + $0xa8] sm:$0xf]
      %v2611 = vld [vmem:[#allocation12 + $0xac] sm:$0xf]
      %v2612 = vld [vmem:[#allocation12 + $0xb0] sm:$0xf]
      %v2613 = vld [vmem:[#allocation12 + $0xb4] sm:$0xf]
      %v2614 = vld [vmem:[#allocation12 + $0xb8] sm:$0xf]
      %v2615 = vld [vmem:[#allocation12 + $0xbc] sm:$0xf]
      %v2616 = vld [vmem:[#allocation12 + $0xc0] sm:$0xf]
      %v2617 = vld [vmem:[#allocation12 + $0xc4] sm:$0xf]
      %v2618 = vld [vmem:[#allocation12 + $0xc8] sm:$0xf]
      %v2619 = vld [vmem:[#allocation12 + $0xcc] sm:$0xf]
      %v2620 = vld [vmem:[#allocation12 + $0xd0] sm:$0xf]
      %v2621 = vld [vmem:[#allocation12 + $0xd4] sm:$0xf]
      %v2622 = vld [vmem:[#allocation12 + $0xd8] sm:$0xf]
      %v2623 = vld [vmem:[#allocation12 + $0xdc] sm:$0xf]
      %v2624 = vld [vmem:[#allocation12 + $0xe0] sm:$0xf]
      %v2625 = vld [vmem:[#allocation12 + $0xe4] sm:$0xf]
      %v2626 = vld [vmem:[#allocation12 + $0xe8] sm:$0xf]
      %v2627 = vld [vmem:[#allocation12 + $0xec] sm:$0xf]
      %v2628 = vld [vmem:[#allocation12 + $0xf0] sm:$0xf]
      %v2629 = vld [vmem:[#allocation12 + $0xf4] sm:$0xf]
      %v2630 = vld [vmem:[#allocation12 + $0xf8] sm:$0xf]
      %v2631 = vld [vmem:[#allocation12 + $0xfc] sm:$0xf]
      %v2632 = vld [vmem:[#allocation12 + $0x100] sm:$0xf]
      %v2633 = vld [vmem:[#allocation12 + $0x104] sm:$0xf]
      %v2634 = vld [vmem:[#allocation12 + $0x108] sm:$0xf]
      %v2635 = vld [vmem:[#allocation12 + $0x10c] sm:$0xf]
      %v2636 = vld [vmem:[#allocation12 + $0x110] sm:$0xf]
      %v2637 = vld [vmem:[#allocation12 + $0x114] sm:$0xf]
      %v2638 = vld [vmem:[#allocation12 + $0x118] sm:$0xf]
      %v2639 = vld [vmem:[#allocation12 + $0x11c] sm:$0xf]
      %v2640 = vld [vmem:[#allocation12 + $0x120] sm:$0xf]
      %v2641 = vld [vmem:[#allocation12 + $0x124] sm:$0xf]
      %v2642 = vld [vmem:[#allocation12 + $0x128] sm:$0xf]
      %v2643 = vld [vmem:[#allocation12 + $0x12c] sm:$0xf]
      %v2644 = vld [vmem:[#allocation12 + $0x130] sm:$0xf]
      %v2645 = vld [vmem:[#allocation12 + $0x134] sm:$0xf]
      %v2646 = vld [vmem:[#allocation12 + $0x138] sm:$0xf]
      %v2647 = vld [vmem:[#allocation12 + $0x13c] sm:$0xf]
      %v2648 = vld [vmem:[#allocation12 + $0x140] sm:$0xf]
      %v2649 = vld [vmem:[#allocation12 + $0x144] sm:$0xf]
      %v2650 = vld [vmem:[#allocation12 + $0x148] sm:$0xf]
      %v2651 = vld [vmem:[#allocation12 + $0x14c] sm:$0xf]
      %v2652 = vld [vmem:[#allocation12 + $0x150] sm:$0xf]
      %v2653 = vld [vmem:[#allocation12 + $0x154] sm:$0xf]
      %v2654 = vld [vmem:[#allocation12 + $0x158] sm:$0xf]
      %v2655 = vld [vmem:[#allocation12 + $0x15c] sm:$0xf]
      %v2656 = vld [vmem:[#allocation12 + $0x160] sm:$0xf]
      %v2657 = vld [vmem:[#allocation12 + $0x164] sm:$0xf]
      %v2658 = vld [vmem:[#allocation12 + $0x168] sm:$0xf]
      %v2659 = vld [vmem:[#allocation12 + $0x16c] sm:$0xf]
      %v2660 = vld [vmem:[#allocation12 + $0x170] sm:$0xf]
      %v2661 = vld [vmem:[#allocation12 + $0x174] sm:$0xf]
      %v2662 = vld [vmem:[#allocation12 + $0x178] sm:$0xf]
      %v2663 = vld [vmem:[#allocation12 + $0x17c] sm:$0xf]
      %v2664 = vld [vmem:[#allocation12 + $0x180] sm:$0xf]
      %v2665 = vld [vmem:[#allocation12 + $0x184] sm:$0xf]
      %v2666 = vld [vmem:[#allocation12 + $0x188] sm:$0xf]
      %v2667 = vld [vmem:[#allocation12 + $0x18c] sm:$0xf]
      %v2668 = vld [vmem:[#allocation12 + $0x190] sm:$0xf]
      %v2669 = vld [vmem:[#allocation12 + $0x194] sm:$0xf]
      %v2670 = vld [vmem:[#allocation12 + $0x198] sm:$0xf]
      %v2671 = vld [vmem:[#allocation12 + $0x19c] sm:$0xf]
      %v2672 = vld [vmem:[#allocation12 + $0x1a0] sm:$0xf]
      %v2673 = vld [vmem:[#allocation12 + $0x1a4] sm:$0xf]
      %v2674 = vld [vmem:[#allocation12 + $0x1a8] sm:$0xf]
      %v2675 = vld [vmem:[#allocation12 + $0x1ac] sm:$0xf]
      %v2676 = vld [vmem:[#allocation12 + $0x1b0] sm:$0xf]
      %v2677 = vld [vmem:[#allocation12 + $0x1b4] sm:$0xf]
      %v2678 = vld [vmem:[#allocation12 + $0x1b8] sm:$0xf]
      %v2679 = vld [vmem:[#allocation12 + $0x1bc] sm:$0xf]
      %v2680 = vld [vmem:[#allocation12 + $0x1c0] sm:$0xf]
      %v2681 = vld [vmem:[#allocation12 + $0x1c4] sm:$0xf]
      %v2682 = vld [vmem:[#allocation12 + $0x1c8] sm:$0xf]
      %v2683 = vld [vmem:[#allocation12 + $0x1cc] sm:$0xf]
      %v2684 = vld [vmem:[#allocation12 + $0x1d0] sm:$0xf]
      %v2685 = vld [vmem:[#allocation12 + $0x1d4] sm:$0xf]
      %v2686 = vld [vmem:[#allocation12 + $0x1d8] sm:$0xf]
      %v2687 = vld [vmem:[#allocation12 + $0x1dc] sm:$0xf]
      %v2688 = vld [vmem:[#allocation12 + $0x1e0] sm:$0xf]
      %v2689 = vld [vmem:[#allocation12 + $0x1e4] sm:$0xf]
      %v2690 = vld [vmem:[#allocation12 + $0x1e8] sm:$0xf]
      %v2691 = vld [vmem:[#allocation12 + $0x1ec] sm:$0xf]
      %v2692 = vld [vmem:[#allocation12 + $0x1f0] sm:$0xf]
      %v2693 = vld [vmem:[#allocation12 + $0x1f4] sm:$0xf]
      %v2694 = vld [vmem:[#allocation12 + $0x1f8] sm:$0xf]
      %v2695 = vld [vmem:[#allocation12 + $0x1fc] sm:$0xf]
      %v2696 = vld [vmem:[#allocation14] sm:$0x1]
      %v2698 = vlaneseq
      %v2699 = vshrl.u32 %v2698, 7
      %v2700 = vsub.s32 0, %v2699
      %v2701 = vrot.slane %v2696, %v2700
      %v2831 = vunpack.c.l.b16 %v2568
      %v2832 = vunpack.c.l.b16 %v2569
      %v2833 = vunpack.c.l.b16 %v2570
      %v2834 = vunpack.c.l.b16 %v2571
      %v2835 = vunpack.c.l.b16 %v2572
      %v2836 = vunpack.c.l.b16 %v2573
      %v2837 = vunpack.c.l.b16 %v2574
      %v2838 = vunpack.c.l.b16 %v2575
      %v2839 = vunpack.c.l.b16 %v2576
      %v2840 = vunpack.c.l.b16 %v2577
      %v2841 = vunpack.c.l.b16 %v2578
      %v2842 = vunpack.c.l.b16 %v2579
      %v2843 = vunpack.c.l.b16 %v2580
      %v2844 = vunpack.c.l.b16 %v2581
      %v2845 = vunpack.c.l.b16 %v2582
      %v2846 = vunpack.c.l.b16 %v2583
      %v2847 = vunpack.c.l.b16 %v2584
      %v2848 = vunpack.c.l.b16 %v2585
      %v2849 = vunpack.c.l.b16 %v2586
      %v2850 = vunpack.c.l.b16 %v2587
      %v2851 = vunpack.c.l.b16 %v2588
      %v2852 = vunpack.c.l.b16 %v2589
      %v2853 = vunpack.c.l.b16 %v2590
      %v2854 = vunpack.c.l.b16 %v2591
      %v2855 = vunpack.c.l.b16 %v2592
      %v2856 = vunpack.c.l.b16 %v2593
      %v2857 = vunpack.c.l.b16 %v2594
      %v2858 = vunpack.c.l.b16 %v2595
      %v2859 = vunpack.c.l.b16 %v2596
      %v2860 = vunpack.c.l.b16 %v2597
      %v2861 = vunpack.c.l.b16 %v2598
      %v2862 = vunpack.c.l.b16 %v2599
      %v2863 = vunpack.c.l.b16 %v2600
      %v2864 = vunpack.c.l.b16 %v2601
      %v2865 = vunpack.c.l.b16 %v2602
      %v2866 = vunpack.c.l.b16 %v2603
      %v2867 = vunpack.c.l.b16 %v2604
      %v2868 = vunpack.c.l.b16 %v2605
      %v2869 = vunpack.c.l.b16 %v2606
      %v2870 = vunpack.c.l.b16 %v2607
      %v2871 = vunpack.c.l.b16 %v2608
      %v2872 = vunpack.c.l.b16 %v2609
      %v2873 = vunpack.c.l.b16 %v2610
      %v2874 = vunpack.c.l.b16 %v2611
      %v2875 = vunpack.c.l.b16 %v2612
      %v2876 = vunpack.c.l.b16 %v2613
      %v2877 = vunpack.c.l.b16 %v2614
      %v2878 = vunpack.c.l.b16 %v2615
      %v2879 = vunpack.c.l.b16 %v2616
      %v2880 = vunpack.c.l.b16 %v2617
      %v2881 = vunpack.c.l.b16 %v2618
      %v2882 = vunpack.c.l.b16 %v2619
      %v2883 = vunpack.c.l.b16 %v2620
      %v2884 = vunpack.c.l.b16 %v2621
      %v2885 = vunpack.c.l.b16 %v2622
      %v2886 = vunpack.c.l.b16 %v2623
      %v2887 = vunpack.c.l.b16 %v2624
      %v2888 = vunpack.c.l.b16 %v2625
      %v2889 = vunpack.c.l.b16 %v2626
      %v2890 = vunpack.c.l.b16 %v2627
      %v2891 = vunpack.c.l.b16 %v2628
      %v2892 = vunpack.c.l.b16 %v2629
      %v2893 = vunpack.c.l.b16 %v2630
      %v2894 = vunpack.c.l.b16 %v2631
      %v2895 = vunpack.c.l.b16 %v2632
      %v2896 = vunpack.c.l.b16 %v2633
      %v2897 = vunpack.c.l.b16 %v2634
      %v2898 = vunpack.c.l.b16 %v2635
      %v2899 = vunpack.c.l.b16 %v2636
      %v2900 = vunpack.c.l.b16 %v2637
      %v2901 = vunpack.c.l.b16 %v2638
      %v2902 = vunpack.c.l.b16 %v2639
      %v2903 = vunpack.c.l.b16 %v2640
      %v2904 = vunpack.c.l.b16 %v2641
      %v2905 = vunpack.c.l.b16 %v2642
      %v2906 = vunpack.c.l.b16 %v2643
      %v2907 = vunpack.c.l.b16 %v2644
      %v2908 = vunpack.c.l.b16 %v2645
      %v2909 = vunpack.c.l.b16 %v2646
      %v2910 = vunpack.c.l.b16 %v2647
      %v2911 = vunpack.c.l.b16 %v2648
      %v2912 = vunpack.c.l.b16 %v2649
      %v2913 = vunpack.c.l.b16 %v2650
      %v2914 = vunpack.c.l.b16 %v2651
      %v2915 = vunpack.c.l.b16 %v2652
      %v2916 = vunpack.c.l.b16 %v2653
      %v2917 = vunpack.c.l.b16 %v2654
      %v2918 = vunpack.c.l.b16 %v2655
      %v2919 = vunpack.c.l.b16 %v2656
      %v2920 = vunpack.c.l.b16 %v2657
      %v2921 = vunpack.c.l.b16 %v2658
      %v2922 = vunpack.c.l.b16 %v2659
      %v2923 = vunpack.c.l.b16 %v2660
      %v2924 = vunpack.c.l.b16 %v2661
      %v2925 = vunpack.c.l.b16 %v2662
      %v2926 = vunpack.c.l.b16 %v2663
      %v2927 = vunpack.c.l.b16 %v2664
      %v2928 = vunpack.c.l.b16 %v2665
      %v2929 = vunpack.c.l.b16 %v2666
      %v2930 = vunpack.c.l.b16 %v2667
      %v2931 = vunpack.c.l.b16 %v2668
      %v2932 = vunpack.c.l.b16 %v2669
      %v2933 = vunpack.c.l.b16 %v2670
      %v2934 = vunpack.c.l.b16 %v2671
      %v2935 = vunpack.c.l.b16 %v2672
      %v2936 = vunpack.c.l.b16 %v2673
      %v2937 = vunpack.c.l.b16 %v2674
      %v2938 = vunpack.c.l.b16 %v2675
      %v2939 = vunpack.c.l.b16 %v2676
      %v2940 = vunpack.c.l.b16 %v2677
      %v2941 = vunpack.c.l.b16 %v2678
      %v2942 = vunpack.c.l.b16 %v2679
      %v2943 = vunpack.c.l.b16 %v2680
      %v2944 = vunpack.c.l.b16 %v2681
      %v2945 = vunpack.c.l.b16 %v2682
      %v2946 = vunpack.c.l.b16 %v2683
      %v2947 = vunpack.c.l.b16 %v2684
      %v2948 = vunpack.c.l.b16 %v2685
      %v2949 = vunpack.c.l.b16 %v2686
      %v2950 = vunpack.c.l.b16 %v2687
      %v2951 = vunpack.c.l.b16 %v2688
      %v2952 = vunpack.c.l.b16 %v2689
      %v2953 = vunpack.c.l.b16 %v2690
      %v2954 = vunpack.c.l.b16 %v2691
      %v2955 = vunpack.c.l.b16 %v2692
      %v2956 = vunpack.c.l.b16 %v2693
      %v2957 = vunpack.c.l.b16 %v2694
      %v2958 = vunpack.c.l.b16 %v2695
      %v2959 = vpack.c.b16 %v2832, %v2831
      %v2960 = vpack.c.b16 %v2834, %v2833
      %v2961 = vpack.c.b16 %v2836, %v2835
      %v2962 = vpack.c.b16 %v2838, %v2837
      %v2963 = vpack.c.b16 %v2840, %v2839
      %v2964 = vpack.c.b16 %v2842, %v2841
      %v2965 = vpack.c.b16 %v2844, %v2843
      %v2966 = vpack.c.b16 %v2846, %v2845
      %v2967 = vpack.c.b16 %v2848, %v2847
      %v2968 = vpack.c.b16 %v2850, %v2849
      %v2969 = vpack.c.b16 %v2852, %v2851
      %v2970 = vpack.c.b16 %v2854, %v2853
      %v2971 = vpack.c.b16 %v2856, %v2855
      %v2972 = vpack.c.b16 %v2858, %v2857
      %v2973 = vpack.c.b16 %v2860, %v2859
      %v2974 = vpack.c.b16 %v2862, %v2861
      %v2975 = vpack.c.b16 %v2864, %v2863
      %v2976 = vpack.c.b16 %v2866, %v2865
      %v2977 = vpack.c.b16 %v2868, %v2867
      %v2978 = vpack.c.b16 %v2870, %v2869
      %v2979 = vpack.c.b16 %v2872, %v2871
      %v2980 = vpack.c.b16 %v2874, %v2873
      %v2981 = vpack.c.b16 %v2876, %v2875
      %v2982 = vpack.c.b16 %v2878, %v2877
      %v2983 = vpack.c.b16 %v2880, %v2879
      %v2984 = vpack.c.b16 %v2882, %v2881
      %v2985 = vpack.c.b16 %v2884, %v2883
      %v2986 = vpack.c.b16 %v2886, %v2885
      %v2987 = vpack.c.b16 %v2888, %v2887
      %v2988 = vpack.c.b16 %v2890, %v2889
      %v2989 = vpack.c.b16 %v2892, %v2891
      %v2990 = vpack.c.b16 %v2894, %v2893
      %v2991 = vpack.c.b16 %v2896, %v2895
      %v2992 = vpack.c.b16 %v2898, %v2897
      %v2993 = vpack.c.b16 %v2900, %v2899
      %v2994 = vpack.c.b16 %v2902, %v2901
      %v2995 = vpack.c.b16 %v2904, %v2903
      %v2996 = vpack.c.b16 %v2906, %v2905
      %v2997 = vpack.c.b16 %v2908, %v2907
      %v2998 = vpack.c.b16 %v2910, %v2909
      %v2999 = vpack.c.b16 %v2912, %v2911
      %v3000 = vpack.c.b16 %v2914, %v2913
      %v3001 = vpack.c.b16 %v2916, %v2915
      %v3002 = vpack.c.b16 %v2918, %v2917
      %v3003 = vpack.c.b16 %v2920, %v2919
      %v3004 = vpack.c.b16 %v2922, %v2921
      %v3005 = vpack.c.b16 %v2924, %v2923
      %v3006 = vpack.c.b16 %v2926, %v2925
      %v3007 = vpack.c.b16 %v2928, %v2927
      %v3008 = vpack.c.b16 %v2930, %v2929
      %v3009 = vpack.c.b16 %v2932, %v2931
      %v3010 = vpack.c.b16 %v2934, %v2933
      %v3011 = vpack.c.b16 %v2936, %v2935
      %v3012 = vpack.c.b16 %v2938, %v2937
      %v3013 = vpack.c.b16 %v2940, %v2939
      %v3014 = vpack.c.b16 %v2942, %v2941
      %v3015 = vpack.c.b16 %v2944, %v2943
      %v3016 = vpack.c.b16 %v2946, %v2945
      %v3017 = vpack.c.b16 %v2948, %v2947
      %v3018 = vpack.c.b16 %v2950, %v2949
      %v3019 = vpack.c.b16 %v2952, %v2951
      %v3020 = vpack.c.b16 %v2954, %v2953
      %v3021 = vpack.c.b16 %v2956, %v2955
      %v3022 = vpack.c.b16 %v2958, %v2957
      %3087 = vmatprep.subr.bf16.mxu0 0
      %3088 = vmatpush1.bf16.msra.mxu0 %v2959
      %3089 = vmatprep.subr.bf16.mxu0 0
      %3090 = vmatpush1.bf16.msra.mxu0 %v2960
      %3091 = vmatprep.subr.bf16.mxu0 0
      %3092 = vmatpush1.bf16.msra.mxu0 %v2961
      %3093 = vmatprep.subr.bf16.mxu0 0
      %3094 = vmatpush1.bf16.msra.mxu0 %v2962
      %3095 = vmatprep.subr.bf16.mxu0 0
      %3096 = vmatpush1.bf16.msra.mxu0 %v2963
      %3097 = vmatprep.subr.bf16.mxu0 0
      %3098 = vmatpush1.bf16.msra.mxu0 %v2964
      %3099 = vmatprep.subr.bf16.mxu0 0
      %3100 = vmatpush1.bf16.msra.mxu0 %v2965
      %3101 = vmatprep.subr.bf16.mxu0 0
      %3102 = vmatpush1.bf16.msra.mxu0 %v2966
      %3103 = vmatprep.subr.bf16.mxu0 0
      %3104 = vmatpush1.bf16.msra.mxu0 %v2967
      %3105 = vmatprep.subr.bf16.mxu0 0
      %3106 = vmatpush1.bf16.msra.mxu0 %v2968
      %3107 = vmatprep.subr.bf16.mxu0 0
      %3108 = vmatpush1.bf16.msra.mxu0 %v2969
      %3109 = vmatprep.subr.bf16.mxu0 0
      %3110 = vmatpush1.bf16.msra.mxu0 %v2970
      %3111 = vmatprep.subr.bf16.mxu0 0
      %3112 = vmatpush1.bf16.msra.mxu0 %v2971
      %3113 = vmatprep.subr.bf16.mxu0 0
      %3114 = vmatpush1.bf16.msra.mxu0 %v2972
      %3115 = vmatprep.subr.bf16.mxu0 0
      %3116 = vmatpush1.bf16.msra.mxu0 %v2973
      %3117 = vmatprep.subr.bf16.mxu0 0
      %3118 = vmatpush1.bf16.msra.mxu0 %v2974
      %3119 = vmatprep.mubr.bf16.mxu0 %v2561
      %3120 = vmatmul.mubr.bf16.gmra.mrb[0].mxu0 %v2560
      %v3121 = vpop.f32.mrb[0].mxu0
      %v3122 = vadd.f32 %v2701, %v3121
      %v3123 = vpop.f32.mrb[0].mxu0
      %v3124 = vpop.f32.mrb[0].mxu0
      %v3125 = vpop.f32.mrb[0].mxu0
      %3126 = vdwg.mxu0
      %3127 = vmatprep.subr.bf16.mxu0 0
      %3128 = vmatpush1.bf16.msra.mxu0 %v2975
      %3129 = vmatprep.subr.bf16.mxu0 0
      %3130 = vmatpush1.bf16.msra.mxu0 %v2976
      %3131 = vmatprep.subr.bf16.mxu0 0
      %3132 = vmatpush1.bf16.msra.mxu0 %v2977
      %3133 = vmatprep.subr.bf16.mxu0 0
      %3134 = vmatpush1.bf16.msra.mxu0 %v2978
      %3135 = vmatprep.subr.bf16.mxu0 0
      %3136 = vmatpush1.bf16.msra.mxu0 %v2979
      %3137 = vmatprep.subr.bf16.mxu0 0
      %3138 = vmatpush1.bf16.msra.mxu0 %v2980
      %3139 = vmatprep.subr.bf16.mxu0 0
      %3140 = vmatpush1.bf16.msra.mxu0 %v2981
      %3141 = vmatprep.subr.bf16.mxu0 0
      %3142 = vmatpush1.bf16.msra.mxu0 %v2982
      %3143 = vmatprep.subr.bf16.mxu0 0
      %3144 = vmatpush1.bf16.msra.mxu0 %v2983
      %3145 = vmatprep.subr.bf16.mxu0 0
      %3146 = vmatpush1.bf16.msra.mxu0 %v2984
      %3147 = vmatprep.subr.bf16.mxu0 0
      %3148 = vmatpush1.bf16.msra.mxu0 %v2985
      %3149 = vmatprep.subr.bf16.mxu0 0
      %3150 = vmatpush1.bf16.msra.mxu0 %v2986
      %3151 = vmatprep.subr.bf16.mxu0 0
      %3152 = vmatpush1.bf16.msra.mxu0 %v2987
      %3153 = vmatprep.subr.bf16.mxu0 0
      %3154 = vmatpush1.bf16.msra.mxu0 %v2988
      %3155 = vmatprep.subr.bf16.mxu0 0
      %3156 = vmatpush1.bf16.msra.mxu0 %v2989
      %3157 = vmatprep.subr.bf16.mxu0 0
      %3158 = vmatpush1.bf16.msra.mxu0 %v2990
      %3159 = vmatprep.mubr.bf16.mxu0 %v2563
      %3160 = vmatmul.mubr.bf16.gmra.mrb[0].mxu0 %v2562
      %v3161 = vpop.f32.mrb[0].mxu0
      %v3162 = vadd.f32 %v3122, %v3161
      %v3163 = vpop.f32.mrb[0].mxu0
      %v3164 = vpop.f32.mrb[0].mxu0
      %v3165 = vpop.f32.mrb[0].mxu0
      %3166 = vdwg.mxu0
      %3167 = vmatprep.subr.bf16.mxu0 0
      %3168 = vmatpush1.bf16.msra.mxu0 %v2991
      %3169 = vmatprep.subr.bf16.mxu0 0
      %3170 = vmatpush1.bf16.msra.mxu0 %v2992
      %3171 = vmatprep.subr.bf16.mxu0 0
      %3172 = vmatpush1.bf16.msra.mxu0 %v2993
      %3173 = vmatprep.subr.bf16.mxu0 0
      %3174 = vmatpush1.bf16.msra.mxu0 %v2994
      %3175 = vmatprep.subr.bf16.mxu0 0
      %3176 = vmatpush1.bf16.msra.mxu0 %v2995
      %3177 = vmatprep.subr.bf16.mxu0 0
      %3178 = vmatpush1.bf16.msra.mxu0 %v2996
      %3179 = vmatprep.subr.bf16.mxu0 0
      %3180 = vmatpush1.bf16.msra.mxu0 %v2997
      %3181 = vmatprep.subr.bf16.mxu0 0
      %3182 = vmatpush1.bf16.msra.mxu0 %v2998
      %3183 = vmatprep.subr.bf16.mxu0 0
      %3184 = vmatpush1.bf16.msra.mxu0 %v2999
      %3185 = vmatprep.subr.bf16.mxu0 0
      %3186 = vmatpush1.bf16.msra.mxu0 %v3000
      %3187 = vmatprep.subr.bf16.mxu0 0
      %3188 = vmatpush1.bf16.msra.mxu0 %v3001
      %3189 = vmatprep.subr.bf16.mxu0 0
      %3190 = vmatpush1.bf16.msra.mxu0 %v3002
      %3191 = vmatprep.subr.bf16.mxu0 0
      %3192 = vmatpush1.bf16.msra.mxu0 %v3003
      %3193 = vmatprep.subr.bf16.mxu0 0
      %3194 = vmatpush1.bf16.msra.mxu0 %v3004
      %3195 = vmatprep.subr.bf16.mxu0 0
      %3196 = vmatpush1.bf16.msra.mxu0 %v3005
      %3197 = vmatprep.subr.bf16.mxu0 0
      %3198 = vmatpush1.bf16.msra.mxu0 %v3006
      %3199 = vmatprep.mubr.bf16.mxu0 %v2565
      %3200 = vmatmul.mubr.bf16.gmra.mrb[0].mxu0 %v2564
      %v3201 = vpop.f32.mrb[0].mxu0
      %v3202 = vadd.f32 %v3162, %v3201
      %v3203 = vpop.f32.mrb[0].mxu0
      %v3204 = vpop.f32.mrb[0].mxu0
      %v3205 = vpop.f32.mrb[0].mxu0
      %3206 = vdwg.mxu0
      %3207 = vmatprep.subr.bf16.mxu0 0
      %3208 = vmatpush1.bf16.msra.mxu0 %v3007
      %3209 = vmatprep.subr.bf16.mxu0 0
      %3210 = vmatpush1.bf16.msra.mxu0 %v3008
      %3211 = vmatprep.subr.bf16.mxu0 0
      %3212 = vmatpush1.bf16.msra.mxu0 %v3009
      %3213 = vmatprep.subr.bf16.mxu0 0
      %3214 = vmatpush1.bf16.msra.mxu0 %v3010
      %3215 = vmatprep.subr.bf16.mxu0 0
      %3216 = vmatpush1.bf16.msra.mxu0 %v3011
      %3217 = vmatprep.subr.bf16.mxu0 0
      %3218 = vmatpush1.bf16.msra.mxu0 %v3012
      %3219 = vmatprep.subr.bf16.mxu0 0
      %3220 = vmatpush1.bf16.msra.mxu0 %v3013
      %3221 = vmatprep.subr.bf16.mxu0 0
      %3222 = vmatpush1.bf16.msra.mxu0 %v3014
      %3223 = vmatprep.subr.bf16.mxu0 0
      %3224 = vmatpush1.bf16.msra.mxu0 %v3015
      %3225 = vmatprep.subr.bf16.mxu0 0
      %3226 = vmatpush1.bf16.msra.mxu0 %v3016
      %3227 = vmatprep.subr.bf16.mxu0 0
      %3228 = vmatpush1.bf16.msra.mxu0 %v3017
      %3229 = vmatprep.subr.bf16.mxu0 0
      %3230 = vmatpush1.bf16.msra.mxu0 %v3018
      %3231 = vmatprep.subr.bf16.mxu0 0
      %3232 = vmatpush1.bf16.msra.mxu0 %v3019
      %3233 = vmatprep.subr.bf16.mxu0 0
      %3234 = vmatpush1.bf16.msra.mxu0 %v3020
      %3235 = vmatprep.subr.bf16.mxu0 0
      %3236 = vmatpush1.bf16.msra.mxu0 %v3021
      %3237 = vmatprep.subr.bf16.mxu0 0
      %3238 = vmatpush1.bf16.msra.mxu0 %v3022
      %3239 = vmatprep.mubr.bf16.mxu0 %v2567
      %3240 = vmatmul.mubr.bf16.gmra.mrb[0].mxu0 %v2566
      %v3241 = vpop.f32.mrb[0].mxu0
      %v3242 = vadd.f32 %v3202, %v3241
      %v3243 = vpop.f32.mrb[0].mxu0
      %v3244 = vpop.f32.mrb[0].mxu0
      %v3245 = vpop.f32.mrb[0].mxu0
      %3246 = vdwg.mxu0
      %3247 = vst [vmem:[#allocation15] sm:$0xff] %v3242
    $region65: #{mlp_forward.1} parent=1 // pred_fallthru
      _
    // Predicated region
    $region66: #{mlp_forward.1} parent=1 // pred_check
      _
    $region67: #{mlp_forward.1} parent=1 // pred_check_branch
      %3249 = sbr.rel (0) target = $region69
    $region68: #{mlp_forward.1} parent=1 // pred_region
      %s3251 = ssub.s32 128, 128
      %3252 = vsyncadd [#allocation5], %s3251
      %s3254 = sshll.u32 [#allocation15], 4
      %s3255 = int_to_ptr.vmem [resolvable:$true] %s3254
      %3257 = dma.vmem_to_hbm [thread:$0]  %s3255, 128, %s7, [#allocation5]
    $region69: #{mlp_forward.1} parent=1 // pred_fallthru
      _
    // Predicated region
    $region70: #{mlp_forward.1} parent=1 // pred_check
      _
    $region71: #{mlp_forward.1} parent=1 // pred_check_branch
      %3259 = sbr.rel (0) target = $region73
    $region72: #{mlp_forward.1} parent=1 // pred_region
      %3260 = dma.done [#allocation5], 128
    $region73: #{mlp_forward.1} parent=1 // pred_fallthru
      _
    %3261 = vsyncpa [#allocation4], 1
    %3262 = vsyncpa [#allocation7], 1
    %3263 = vsyncpa [#allocation10], 1
    %3264 = vsyncpa [#allocation13], 1
    %3265 = vsyncpa [#allocation5], 1

</llo_original>
